<compile_context>
chip_gen: v7x
topology: tpu7x:2x2x1
jax: 0.10.0
libtpu: 0.0.40
codegen_flags: <defaults>
</compile_context>

<pallas_src>
import math

import numpy as np
import jax
import jax.numpy as jnp
from jax import lax
from jax.experimental import pallas as pl
from jax.experimental.pallas import tpu as pltpu

# ---- model config (small, consistent with DecoderModel's ModelConfig) ----
D_MODEL = 32
N_HEADS = 4
N_KVHEADS = 2
HEAD_DIM = D_MODEL // N_HEADS                       # 8
D_INTER = 64
N_LAYERS = 2
VOCAB = 64
MAX_SEQ = 16
EPS = 1e-5
BATCH = 2
SEQ = 8
QKV_OUT = HEAD_DIM * (N_HEADS + 2 * N_KVHEADS)      # 64
NEG = -1e30                                         # additive-mask "minus infinity"

NQ = BATCH * N_HEADS * SEQ                          # 64 stacked (batch, head, pos) query rows
NKV = BATCH * N_KVHEADS * SEQ                       # 32 stacked (batch, kvhead, pos) key rows
ROWS = BATCH * SEQ                                  # 16 stacked (batch, pos) token rows

# --- bf16 selector slab (width 64) row offsets ---
S_RQK = 0                                  # (NQ+NKV, ROWS) row gather for Q then K/V
S_CREP = S_RQK + NQ + NKV                  # (QKV_OUT, 2*D_MODEL) K/V column replication
S_SELSUM = S_CREP + QKV_OUT                # (ROWS, NQ) per-token sum over the 4 head rows
S_ROWS = S_SELSUM + ROWS                   # 176

# --- f32 mask slab (width 64) row offsets ---
M_QMASK = 0                                # (NQ, 64)  keep the true q column group
M_KVMASK = M_QMASK + NQ                    # (NKV, 64) keep the true k / v column groups
M_QHMASK = M_KVMASK + NKV                  # (NQ, 64)  keep own head's output group (cols 32:64)
M_ADDMASK = M_QHMASK + NQ                  # (NQ, NKV) batch / kv-head / causal additive mask
M_ROWS = M_ADDMASK + NQ                    # 224

# --- bf16 weight slab (width 128); per-layer row layout ---
W_STRIDE = 160
W_QKV = 0                                  # (D_MODEL, QKV_OUT)
W_UPGATE = 32                              # (D_MODEL, 2*D_INTER)   [up | gate]
W_OUT = 64                                 # (D_MODEL, D_MODEL)
W_DOWN = 96                                # (D_INTER, D_MODEL)
W_LM = N_LAYERS * W_STRIDE                 # (D_MODEL, VOCAB)
W_ROWS = W_LM + D_MODEL                    # 352

# --- f32 vector slab (width 128); per-layer rows: ln1g, ln1b, ln2g, ln2b, b_upgate, b_down ---
V_STRIDE = 6
V_FIN = N_LAYERS * V_STRIDE                # rows: fin_g, fin_b, b_lm
V_ROWS = V_FIN + 3                         # 15


# ---------------- shared math helpers (kernel and reference) ----------------
def _layernorm(x, gamma, beta, eps):
    mu = jnp.mean(x, axis=-1, keepdims=True)
    var = jnp.mean((x - mu) ** 2, axis=-1, keepdims=True)
    return (x - mu) * lax.rsqrt(var + eps) * gamma + beta


def _gelu_tanh(x):
    c = math.sqrt(2.0 / math.pi)
    return 0.5 * x * (1.0 + jnp.tanh(c * (x + 0.044715 * x * x * x)))


# ------------------------------- fused Pallas kernel ----------------------------
def fused_decoder_kernel(x_ref, s_ref, m_ref, w_ref, v_ref, o_ref):
    f32, bf16 = jnp.float32, jnp.bfloat16
    scale = jnp.float32(HEAD_DIM ** -0.5)

    x = x_ref[...]                                   # (ROWS, D) f32, batch stacked on rows

    for li in range(N_LAYERS):                       # static unroll over layers
        wb, vb = li * W_STRIDE, li * V_STRIDE
        ln1g = v_ref[vb + 0:vb + 1, 0:D_MODEL]
        ln1b = v_ref[vb + 1:vb + 2, 0:D_MODEL]
        ln2g = v_ref[vb + 2:vb + 3, 0:D_MODEL]
        ln2b = v_ref[vb + 3:vb + 4, 0:D_MODEL]
        bupg = v_ref[vb + 4:vb + 5, :]
        bdwn = v_ref[vb + 5:vb + 6, 0:D_MODEL]

        # ---------------- attention ----------------
        xn = _layernorm(x, ln1g, ln1b, EPS)
        qkv = jnp.dot(xn.astype(bf16),
                      w_ref[wb + W_QKV:wb + W_QKV + D_MODEL, 0:QKV_OUT],
                      preferred_element_type=f32)                       # (ROWS, 64)

        # One row-gather matmul builds every (batch, head, pos) source row for Q and K/V;
        # VPU lane masks isolate the true 8-wide column group (torch's raw row-major reshape).
        g = jnp.dot(s_ref[S_RQK:S_RQK + NQ + NKV, 0:ROWS], qkv.astype(bf16),
                    preferred_element_type=f32)                         # (NQ+NKV, 64)
        qg = g[0:NQ, :] * m_ref[M_QMASK:M_QMASK + NQ, :]                # q in own group, 0 elsewhere
        kvm = g[NQ:NQ + NKV, :] * m_ref[M_KVMASK:M_KVMASK + NKV, :]     # true k / v groups only
        # Replicate each k across the 4 query column groups (cols 0:32) and each v across the
        # 4 head output groups (cols 32:64) so ONE score matmul and ONE pv matmul serve every
        # (batch, head) pair; mismatched pairs are killed by the additive mask below.
        kvrep = jnp.dot(kvm.astype(bf16), s_ref[S_CREP:S_CREP + QKV_OUT, :],
                        preferred_element_type=f32)                     # (NKV, 64) = [k x4 | v x4]

        s = lax.dot_general(qg.astype(bf16), kvrep.astype(bf16),
                            (((1,), (1,)), ((), ())),
                            preferred_element_type=f32)                 # (NQ, NKV)
        s = s * scale + m_ref[M_ADDMASK:M_ADDMASK + NQ, 0:NKV]
        # Softmax: row-max subtraction dropped on purpose (valid scores are O(0.1) at this
        # scale; masked entries underflow to exactly 0).  Attn-score dropout = identity (eval).
        p = jnp.exp(s)
        p = p * pl.reciprocal(jnp.sum(p, axis=-1, keepdims=True), approx=True)

        pv = jnp.dot(p.astype(bf16), kvrep.astype(bf16),
                     preferred_element_type=f32)                        # (NQ, 64), out in cols 32:64
        pv = pv * m_ref[M_QHMASK:M_QHMASK + NQ, :]                      # keep own head's group only
        a = jnp.dot(s_ref[S_SELSUM:S_SELSUM + ROWS, :], pv.astype(bf16),
                    preferred_element_type=f32)                         # (ROWS, 64): heads in blocks
        attn = jnp.dot(a[:, D_MODEL:].astype(bf16),
                       w_ref[wb + W_OUT:wb + W_OUT + D_MODEL, 0:D_MODEL],
                       preferred_element_type=f32)                      # (ROWS, D)
        x = x + attn                                                    # residual

        # ---------------- gated FFN (up & gate fused -> one 128-lane matmul) ----------------
        xn = _layernorm(x, ln2g, ln2b, EPS)
        ug = jnp.dot(xn.astype(bf16),
                     w_ref[wb + W_UPGATE:wb + W_UPGATE + D_MODEL, :],
                     preferred_element_type=f32) + bupg                 # (ROWS, 128)
        fuse = ug[:, 0:D_INTER] * _gelu_tanh(ug[:, D_INTER:2 * D_INTER])
        x = x + jnp.dot(fuse.astype(bf16),
                        w_ref[wb + W_DOWN:wb + W_DOWN + D_INTER, 0:D_MODEL],
                        preferred_element_type=f32) + bdwn              # residual

    # ------------- final LayerNorm + LM head over all positions (wrapper keeps last token) ----
    xn = _layernorm(x, v_ref[V_FIN + 0:V_FIN + 1, 0:D_MODEL],
                    v_ref[V_FIN + 1:V_FIN + 2, 0:D_MODEL], EPS)
    o_ref[...] = (jnp.dot(xn.astype(bf16), w_ref[W_LM:W_LM + D_MODEL, 0:VOCAB],
                          preferred_element_type=f32)
                  + v_ref[V_FIN + 2:V_FIN + 3, 0:VOCAB])


# ------------------------------- pallas_call wrapper ---------------------------
def fused_forward(x0, selbf, maskf, wslab, vslab):
    # Single grid-less invocation: ~200 KB of operands, everything resident in VMEM.
    return pl.pallas_call(
        fused_decoder_kernel,
        out_shape=jax.ShapeDtypeStruct((ROWS, VOCAB), jnp.float32),
        compiler_params=pltpu.CompilerParams(vmem_limit_bytes=8 * 1024 * 1024),
    )(x0, selbf, maskf, wslab, vslab)


# ------------------------------- host-side constant / weight packing -------------------------
def build_constants():
    """Precompute the selection / mask slabs that encode (a) the torch raw row-major head
    reshape, (b) batch block-diagonality, (c) GQA head->kv-head pairing, (d) causality."""
    B, T, NH, KV, HD, D = BATCH, SEQ, N_HEADS, N_KVHEADS, HEAD_DIM, D_MODEL
    sel = np.zeros((S_ROWS, 2 * D), np.float32)
    msk = np.zeros((M_ROWS, 2 * D), np.float32)

    for b in range(B):
        for k in range(NH):
            for l in range(T):
                rq = b * NH * T + k * T + l
                src = ((k * T + l) * HD) // D            # source seq row of the raw reshape
                grp = (k * T + l) % NH                   # source 8-wide column group
                sel[S_RQK + rq, b * T + src] = 1.0
                msk[M_QMASK + rq, grp * HD:(grp + 1) * HD] = 1.0
                msk[M_QHMASK + rq, D + k * HD:D + (k + 1) * HD] = 1.0
                sel[S_SELSUM + b * T + l, rq] = 1.0
        for h in range(KV):
            for j in range(T):
                rk = b * KV * T + h * T + j
                src = ((h * T + j) * HD) // (KV * HD)
                grp = (h * T + j) % KV
                sel[S_RQK + NQ + rk, b * T + src] = 1.0
                msk[M_KVMASK + rk, NH * HD + grp * HD:NH * HD + (grp + 1) * HD] = 1.0
                msk[M_KVMASK + rk,
                    (NH + KV) * HD + grp * HD:(NH + KV) * HD + (grp + 1) * HD] = 1.0

    # K -> replicated into all 4 groups of cols 0:32, V -> all 4 groups of cols 32:64
    for cg in range(KV):
        for d in range(HD):
            for gdst in range(NH):
                sel[S_CREP + NH * HD + cg * HD + d, gdst * HD + d] = 1.0
                sel[S_CREP + (NH + KV) * HD + cg * HD + d, D + gdst * HD + d] = 1.0

    # additive mask: 0 where (same batch) & (kv head == q head % KV) & (key pos <= query pos)
    msk[M_ADDMASK:M_ADDMASK + NQ, 0:NKV] = NEG
    for b in range(B):
        for k in range(NH):
            h = k % KV
            for l in range(T):
                rq = b * NH * T + k * T + l
                col0 = b * KV * T + h * T
                msk[M_ADDMASK + rq, col0:col0 + l + 1] = 0.0

    return jnp.asarray(sel, jnp.bfloat16), jnp.asarray(msk, jnp.float32)


def init_params(key):
    keys = iter(jax.random.split(key, 2 + 5 * N_LAYERS))

    def nrm(shape):
        return 0.02 * jax.random.normal(next(keys), shape, jnp.float32)

    params = {'emb': nrm((VOCAB, D_MODEL)), 'layers': []}
    for _ in range(N_LAYERS):
        params['layers'].append(dict(
            ln1_g=jnp.ones((D_MODEL,), jnp.float32), ln1_b=jnp.zeros((D_MODEL,), jnp.float32),
            wqkv=nrm((D_MODEL, QKV_OUT)),
            wout=nrm((D_MODEL, D_MODEL)),
            ln2_g=jnp.ones((D_MODEL,), jnp.float32), ln2_b=jnp.zeros((D_MODEL,), jnp.float32),
            wup=nrm((D_MODEL, D_INTER)), bup=jnp.zeros((D_INTER,), jnp.float32),
            wgate=nrm((D_MODEL, D_INTER)), bgate=jnp.zeros((D_INTER,), jnp.float32),
            wdown=nrm((D_INTER, D_MODEL)), bdown=jnp.zeros((D_MODEL,), jnp.float32),
        ))
    params['fin_g'] = jnp.ones((D_MODEL,), jnp.float32)
    params['fin_b'] = jnp.zeros((D_MODEL,), jnp.float32)
    params['wlm'] = nrm((D_MODEL, VOCAB))
    params['blm'] = jnp.zeros((VOCAB,), jnp.float32)
    return params


def pack_params(params):
    """Pack all matmul weights into one bf16 slab and all (1, ·) vectors into one f32 slab."""
    w = np.zeros((W_ROWS, 128), np.float32)
    v = np.zeros((V_ROWS, 128), np.float32)
    for li, lp in enumerate(params['layers']):
        wb, vb = li * W_STRIDE, li * V_STRIDE
        w[wb + W_QKV:wb + W_QKV + D_MODEL, 0:QKV_OUT] = np.asarray(lp['wqkv'])
        w[wb + W_UPGATE:wb + W_UPGATE + D_MODEL, 0:2 * D_INTER] = np.concatenate(
            [np.asarray(lp['wup']), np.asarray(lp['wgate'])], axis=-1)
        w[wb + W_OUT:wb + W_OUT + D_MODEL, 0:D_MODEL] = np.asarray(lp['wout'])
        w[wb + W_DOWN:wb + W_DOWN + D_INTER, 0:D_MODEL] = np.asarray(lp['wdown'])
        v[vb + 0, 0:D_MODEL] = np.asarray(lp['ln1_g'])
        v[vb + 1, 0:D_MODEL] = np.asarray(lp['ln1_b'])
        v[vb + 2, 0:D_MODEL] = np.asarray(lp['ln2_g'])
        v[vb + 3, 0:D_MODEL] = np.asarray(lp['ln2_b'])
        v[vb + 4, 0:2 * D_INTER] = np.concatenate([np.asarray(lp['bup']), np.asarray(lp['bgate'])])
        v[vb + 5, 0:D_MODEL] = np.asarray(lp['bdown'])
    w[W_LM:W_LM + D_MODEL, 0:VOCAB] = np.asarray(params['wlm'])
    v[V_FIN + 0, 0:D_MODEL] = np.asarray(params['fin_g'])
    v[V_FIN + 1, 0:D_MODEL] = np.asarray(params['fin_b'])
    v[V_FIN + 2, 0:VOCAB] = np.asarray(params['blm'])
    return jnp.asarray(w, jnp.bfloat16), jnp.asarray(v, jnp.float32)


# ------------------------------- glue (plain JAX / host) -------------------------------
def positional_encoding(max_seq, d_model):
    pos = jnp.arange(max_seq, dtype=jnp.float32)
    exp = jnp.arange(0, d_model, 2, dtype=jnp.float32) / d_model
    freq = jnp.exp(exp * -jnp.log(jnp.float32(10000.0)))
    ang = pos[:, None] * freq[None, :]
    pe = jnp.zeros((max_seq, d_model), jnp.float32)
    pe = pe.at[:, 0::2].set(jnp.sin(ang))
    pe = pe.at[:, 1::2].set(jnp.cos(ang))
    return pe[None]                                                     # (1, max_seq, D)


def decoder_model_forward(idx, emb, wslab, vslab, selbf, maskf):
    B, T = idx.shape
    # TODO(synk): token-embedding gather + positional add are done in the JAX wrapper
    # (a data-dependent gather is not worth a kernel at this size).
    hs = emb[idx] * math.sqrt(D_MODEL) + positional_encoding(MAX_SEQ, D_MODEL)[:, :T]
    x0 = hs.reshape(B * T, D_MODEL)                                     # batch stacked on rows
    logits_all = fused_forward(x0, selbf, maskf, wslab, vslab)          # (B*T, V)
    logits = logits_all.reshape(B, T, VOCAB)[:, -1:, :]                 # last token per sequence
    return logits, None                                                 # (logits, loss=None)


# ------------------------------- pure-JAX reference ------------------------------
def reference_forward(idx, params):
    B, T = idx.shape
    m = jnp.triu(jnp.ones((T, T), jnp.float32), k=1)
    mask = jnp.where(m == 1.0, jnp.float32(-jnp.inf), jnp.float32(0.0))
    hs = params['emb'][idx] * math.sqrt(D_MODEL) + positional_encoding(MAX_SEQ, D_MODEL)[:, :T]
    G = N_HEADS // N_KVHEADS
    for lp in params['layers']:
        r = hs
        xn = _layernorm(hs, lp['ln1_g'], lp['ln1_b'], EPS)
        qkv = xn @ lp['wqkv']
        q, k, v = jnp.split(qkv, [N_HEADS * HEAD_DIM, (N_HEADS + N_KVHEADS) * HEAD_DIM], axis=-1)
        q = q.reshape(B, G, N_KVHEADS, T, HEAD_DIM)     # raw reshape, exactly as in torch
        k = k.reshape(B, N_KVHEADS, T, HEAD_DIM)
        v = v.reshape(B, N_KVHEADS, T, HEAD_DIM)
        s = jnp.einsum('bghld,bhjd->bghlj', q, k) * HEAD_DIM ** -0.5 + mask
        p = jax.nn.softmax(s, axis=-1)
        o = jnp.einsum('bghlj,bhjd->bghld', p, v)
        o = jnp.transpose(o, (0, 3, 1, 2, 4)).reshape(B, T, D_MODEL)    # 'b g h l d -> b l (g h d)'
        hs = o @ lp['wout'] + r
        r = hs
        xn = _layernorm(hs, lp['ln2_g'], lp['ln2_b'], EPS)
        up = xn @ lp['wup'] + lp['bup']
        gate = _gelu_tanh(xn @ lp['wgate'] + lp['bgate'])
        hs = (up * gate) @ lp['wdown'] + lp['bdown'] + r
    hs = _layernorm(hs, params['fin_g'], params['fin_b'], EPS)
    return hs[:, -1:, :] @ params['wlm'] + params['blm']


# --------------------------------------- main ------------------------------------
if __name__ == "__main__":
    key = jax.random.PRNGKey(0)
    k_param, k_idx = jax.random.split(key)
    params = init_params(k_param)
    idx = jax.random.randint(k_idx, (BATCH, SEQ), 0, VOCAB, dtype=jnp.int32)

    wslab, vslab = pack_params(params)
    selbf, maskf = build_constants()

    fwd = jax.jit(decoder_model_forward)
    logits, loss = fwd(idx, params['emb'], wslab, vslab, selbf, maskf)
    logits = jax.block_until_ready(logits)
    assert logits.shape == (BATCH, 1, VOCAB) and loss is None

    ref = jax.block_until_ready(reference_forward(idx, params))
    max_err = float(jnp.max(jnp.abs(logits - ref)))
    # bf16 MXU operands (vs the f32 reference) shift logits by ~1e-3; 2e-2 keeps ample margin.
    assert max_err < 2e-2, f"mismatch vs reference: max abs err = {max_err}"

    print("KERNEL_OK")
</pallas_src>

<mosaic_0001>
module attributes {stable_mosaic.version = 11 : i64} {
  func.func @fused_decoder_kernel(%arg0: memref<16x32xf32, #tpu.memory_space<vmem>>, %arg1: memref<176x64xbf16, #tpu.memory_space<vmem>>, %arg2: memref<224x64xf32, #tpu.memory_space<vmem>>, %arg3: memref<352x128xbf16, #tpu.memory_space<vmem>>, %arg4: memref<15x128xf32, #tpu.memory_space<vmem>>, %arg5: memref<16x64xf32, #tpu.memory_space<vmem>>) attributes {dimension_semantics = [], scalar_prefetch = 0 : i64, scratch_operands = 0 : i64, tpu.core_type = #tpu.core_type<tc>} {
    %c0 = arith.constant 0 : index
    %c0_0 = arith.constant 0 : index
    %0 = vector.load %arg0[%c0, %c0_0] : memref<16x32xf32, #tpu.memory_space<vmem>>, vector<16x32xf32>
    %c0_1 = arith.constant 0 : index
    %c0_2 = arith.constant 0 : index
    %1 = vector.load %arg4[%c0_1, %c0_2] : memref<15x128xf32, #tpu.memory_space<vmem>>, vector<1x32xf32>
    %c1 = arith.constant 1 : index
    %c0_3 = arith.constant 0 : index
    %2 = vector.load %arg4[%c1, %c0_3] : memref<15x128xf32, #tpu.memory_space<vmem>>, vector<1x32xf32>
    %c2 = arith.constant 2 : index
    %c0_4 = arith.constant 0 : index
    %3 = vector.load %arg4[%c2, %c0_4] : memref<15x128xf32, #tpu.memory_space<vmem>>, vector<1x32xf32>
    %c3 = arith.constant 3 : index
    %c0_5 = arith.constant 0 : index
    %4 = vector.load %arg4[%c3, %c0_5] : memref<15x128xf32, #tpu.memory_space<vmem>>, vector<1x32xf32>
    %c4 = arith.constant 4 : index
    %c0_6 = arith.constant 0 : index
    %5 = vector.load %arg4[%c4, %c0_6] : memref<15x128xf32, #tpu.memory_space<vmem>>, vector<1x128xf32>
    %c5 = arith.constant 5 : index
    %c0_7 = arith.constant 0 : index
    %6 = vector.load %arg4[%c5, %c0_7] : memref<15x128xf32, #tpu.memory_space<vmem>>, vector<1x32xf32>
    %cst = arith.constant dense<0.000000e+00> : vector<16xf32>
    %7 = vector.multi_reduction <add>, %0, %cst [1] : vector<16x32xf32> to vector<16xf32>
    %8 = vector.shape_cast %7 : vector<16xf32> to vector<16x1xf32>
    %cst_8 = arith.constant 3.200000e+01 : f32
    %9 = vector.broadcast %cst_8 : f32 to vector<16x1xf32>
    %10 = arith.divf %8, %9 : vector<16x1xf32>
    %11 = vector.broadcast %10 : vector<16x1xf32> to vector<16x32xf32>
    %12 = arith.subf %0, %11 : vector<16x32xf32>
    %13 = arith.mulf %12, %12 : vector<16x32xf32>
    %cst_9 = arith.constant dense<0.000000e+00> : vector<16xf32>
    %14 = vector.multi_reduction <add>, %13, %cst_9 [1] : vector<16x32xf32> to vector<16xf32>
    %15 = vector.shape_cast %14 : vector<16xf32> to vector<16x1xf32>
    %cst_10 = arith.constant 3.200000e+01 : f32
    %16 = vector.broadcast %cst_10 : f32 to vector<16x1xf32>
    %17 = arith.divf %15, %16 : vector<16x1xf32>
    %18 = vector.broadcast %10 : vector<16x1xf32> to vector<16x32xf32>
    %19 = arith.subf %0, %18 : vector<16x32xf32>
    %cst_11 = arith.constant 9.99999974E-6 : f32
    %20 = vector.broadcast %cst_11 : f32 to vector<16x1xf32>
    %21 = arith.addf %17, %20 : vector<16x1xf32>
    %22 = math.rsqrt %21 : vector<16x1xf32>
    %23 = vector.broadcast %22 : vector<16x1xf32> to vector<16x32xf32>
    %24 = arith.mulf %19, %23 : vector<16x32xf32>
    %25 = vector.broadcast %1 : vector<1x32xf32> to vector<16x32xf32>
    %26 = arith.mulf %24, %25 : vector<16x32xf32>
    %27 = vector.broadcast %2 : vector<1x32xf32> to vector<16x32xf32>
    %28 = arith.addf %26, %27 : vector<16x32xf32>
    %29 = arith.truncf %28 : vector<16x32xf32> to vector<16x32xbf16>
    %c0_12 = arith.constant 0 : index
    %c0_13 = arith.constant 0 : index
    %30 = vector.load %arg3[%c0_12, %c0_13] : memref<352x128xbf16, #tpu.memory_space<vmem>>, vector<32x64xbf16>
    %cst_14 = arith.constant dense<0.000000e+00> : vector<16x64xf32>
    %31 = tpu.matmul %29, %30, %cst_14 {dimension_numbers = #tpu.dot_dimension_numbers<[1], [0], [0], [1], [0, 0, 1, 1], [], []>} : vector<16x32xbf16>, vector<32x64xbf16>, vector<16x64xf32> -> vector<16x64xf32>
    %c0_15 = arith.constant 0 : index
    %c0_16 = arith.constant 0 : index
    %32 = vector.load %arg1[%c0_15, %c0_16] : memref<176x64xbf16, #tpu.memory_space<vmem>>, vector<96x16xbf16>
    %33 = arith.truncf %31 : vector<16x64xf32> to vector<16x64xbf16>
    %cst_17 = arith.constant dense<0.000000e+00> : vector<96x64xf32>
    %34 = tpu.matmul %32, %33, %cst_17 {dimension_numbers = #tpu.dot_dimension_numbers<[1], [0], [0], [1], [0, 0, 1, 1], [], []>} : vector<96x16xbf16>, vector<16x64xbf16>, vector<96x64xf32> -> vector<96x64xf32>
    %35 = vector.extract_strided_slice %34 {offsets = [0, 0], sizes = [64, 64], strides = [1, 1]} : vector<96x64xf32> to vector<64x64xf32>
    %c0_18 = arith.constant 0 : index
    %c0_19 = arith.constant 0 : index
    %36 = vector.load %arg2[%c0_18, %c0_19] : memref<224x64xf32, #tpu.memory_space<vmem>>, vector<64x64xf32>
    %37 = arith.mulf %35, %36 : vector<64x64xf32>
    %38 = vector.extract_strided_slice %34 {offsets = [64, 0], sizes = [32, 64], strides = [1, 1]} : vector<96x64xf32> to vector<32x64xf32>
    %c64 = arith.constant 64 : index
    %c0_20 = arith.constant 0 : index
    %39 = vector.load %arg2[%c64, %c0_20] : memref<224x64xf32, #tpu.memory_space<vmem>>, vector<32x64xf32>
    %40 = arith.mulf %38, %39 : vector<32x64xf32>
    %41 = arith.truncf %40 : vector<32x64xf32> to vector<32x64xbf16>
    %c96 = arith.constant 96 : index
    %c0_21 = arith.constant 0 : index
    %42 = vector.load %arg1[%c96, %c0_21] : memref<176x64xbf16, #tpu.memory_space<vmem>>, vector<64x64xbf16>
    %cst_22 = arith.constant dense<0.000000e+00> : vector<32x64xf32>
    %43 = tpu.matmul %41, %42, %cst_22 {dimension_numbers = #tpu.dot_dimension_numbers<[1], [0], [0], [1], [0, 0, 1, 1], [], []>} : vector<32x64xbf16>, vector<64x64xbf16>, vector<32x64xf32> -> vector<32x64xf32>
    %44 = arith.truncf %37 : vector<64x64xf32> to vector<64x64xbf16>
    %45 = arith.truncf %43 : vector<32x64xf32> to vector<32x64xbf16>
    %cst_23 = arith.constant dense<0.000000e+00> : vector<64x32xf32>
    %46 = tpu.matmul %44, %45, %cst_23 {dimension_numbers = #tpu.dot_dimension_numbers<[1], [1], [0], [0], [0, 0, 1, 0], [], []>} : vector<64x64xbf16>, vector<32x64xbf16>, vector<64x32xf32> -> vector<64x32xf32>
    %cst_24 = arith.constant 0.353553385 : f32
    %47 = vector.broadcast %cst_24 : f32 to vector<64x32xf32>
    %48 = arith.mulf %46, %47 : vector<64x32xf32>
    %c160 = arith.constant 160 : index
    %c0_25 = arith.constant 0 : index
    %49 = vector.load %arg2[%c160, %c0_25] : memref<224x64xf32, #tpu.memory_space<vmem>>, vector<64x32xf32>
    %50 = arith.addf %48, %49 : vector<64x32xf32>
    %51 = math.exp %50 : vector<64x32xf32>
    %cst_26 = arith.constant dense<0.000000e+00> : vector<64xf32>
    %52 = vector.multi_reduction <add>, %51, %cst_26 [1] : vector<64x32xf32> to vector<64xf32>
    %53 = vector.shape_cast %52 : vector<64xf32> to vector<64x1xf32>
    %54 = tpu.reciprocal %53 {approx = true} : vector<64x1xf32> -> vector<64x1xf32>
    %55 = vector.broadcast %54 : vector<64x1xf32> to vector<64x32xf32>
    %56 = arith.mulf %51, %55 : vector<64x32xf32>
    %57 = arith.truncf %56 : vector<64x32xf32> to vector<64x32xbf16>
    %58 = arith.truncf %43 : vector<32x64xf32> to vector<32x64xbf16>
    %cst_27 = arith.constant dense<0.000000e+00> : vector<64x64xf32>
    %59 = tpu.matmul %57, %58, %cst_27 {dimension_numbers = #tpu.dot_dimension_numbers<[1], [0], [0], [1], [0, 0, 1, 1], [], []>} : vector<64x32xbf16>, vector<32x64xbf16>, vector<64x64xf32> -> vector<64x64xf32>
    %c96_28 = arith.constant 96 : index
    %c0_29 = arith.constant 0 : index
    %60 = vector.load %arg2[%c96_28, %c0_29] : memref<224x64xf32, #tpu.memory_space<vmem>>, vector<64x64xf32>
    %61 = arith.mulf %59, %60 : vector<64x64xf32>
    %c160_30 = arith.constant 160 : index
    %c0_31 = arith.constant 0 : index
    %62 = vector.load %arg1[%c160_30, %c0_31] : memref<176x64xbf16, #tpu.memory_space<vmem>>, vector<16x64xbf16>
    %63 = arith.truncf %61 : vector<64x64xf32> to vector<64x64xbf16>
    %cst_32 = arith.constant dense<0.000000e+00> : vector<16x64xf32>
    %64 = tpu.matmul %62, %63, %cst_32 {dimension_numbers = #tpu.dot_dimension_numbers<[1], [0], [0], [1], [0, 0, 1, 1], [], []>} : vector<16x64xbf16>, vector<64x64xbf16>, vector<16x64xf32> -> vector<16x64xf32>
    %65 = vector.extract_strided_slice %64 {offsets = [0, 32], sizes = [16, 32], strides = [1, 1]} : vector<16x64xf32> to vector<16x32xf32>
    %66 = arith.truncf %65 : vector<16x32xf32> to vector<16x32xbf16>
    %c64_33 = arith.constant 64 : index
    %c0_34 = arith.constant 0 : index
    %67 = vector.load %arg3[%c64_33, %c0_34] : memref<352x128xbf16, #tpu.memory_space<vmem>>, vector<32x32xbf16>
    %cst_35 = arith.constant dense<0.000000e+00> : vector<16x32xf32>
    %68 = tpu.matmul %66, %67, %cst_35 {dimension_numbers = #tpu.dot_dimension_numbers<[1], [0], [0], [1], [0, 0, 1, 1], [], []>} : vector<16x32xbf16>, vector<32x32xbf16>, vector<16x32xf32> -> vector<16x32xf32>
    %69 = arith.addf %0, %68 : vector<16x32xf32>
    %cst_36 = arith.constant dense<0.000000e+00> : vector<16xf32>
    %70 = vector.multi_reduction <add>, %69, %cst_36 [1] : vector<16x32xf32> to vector<16xf32>
    %71 = vector.shape_cast %70 : vector<16xf32> to vector<16x1xf32>
    %cst_37 = arith.constant 3.200000e+01 : f32
    %72 = vector.broadcast %cst_37 : f32 to vector<16x1xf32>
    %73 = arith.divf %71, %72 : vector<16x1xf32>
    %74 = vector.broadcast %73 : vector<16x1xf32> to vector<16x32xf32>
    %75 = arith.subf %69, %74 : vector<16x32xf32>
    %76 = arith.mulf %75, %75 : vector<16x32xf32>
    %cst_38 = arith.constant dense<0.000000e+00> : vector<16xf32>
    %77 = vector.multi_reduction <add>, %76, %cst_38 [1] : vector<16x32xf32> to vector<16xf32>
    %78 = vector.shape_cast %77 : vector<16xf32> to vector<16x1xf32>
    %cst_39 = arith.constant 3.200000e+01 : f32
    %79 = vector.broadcast %cst_39 : f32 to vector<16x1xf32>
    %80 = arith.divf %78, %79 : vector<16x1xf32>
    %81 = vector.broadcast %73 : vector<16x1xf32> to vector<16x32xf32>
    %82 = arith.subf %69, %81 : vector<16x32xf32>
    %cst_40 = arith.constant 9.99999974E-6 : f32
    %83 = vector.broadcast %cst_40 : f32 to vector<16x1xf32>
    %84 = arith.addf %80, %83 : vector<16x1xf32>
    %85 = math.rsqrt %84 : vector<16x1xf32>
    %86 = vector.broadcast %85 : vector<16x1xf32> to vector<16x32xf32>
    %87 = arith.mulf %82, %86 : vector<16x32xf32>
    %88 = vector.broadcast %3 : vector<1x32xf32> to vector<16x32xf32>
    %89 = arith.mulf %87, %88 : vector<16x32xf32>
    %90 = vector.broadcast %4 : vector<1x32xf32> to vector<16x32xf32>
    %91 = arith.addf %89, %90 : vector<16x32xf32>
    %92 = arith.truncf %91 : vector<16x32xf32> to vector<16x32xbf16>
    %c32 = arith.constant 32 : index
    %c0_41 = arith.constant 0 : index
    %93 = vector.load %arg3[%c32, %c0_41] : memref<352x128xbf16, #tpu.memory_space<vmem>>, vector<32x128xbf16>
    %cst_42 = arith.constant dense<0.000000e+00> : vector<16x128xf32>
    %94 = tpu.matmul %92, %93, %cst_42 {dimension_numbers = #tpu.dot_dimension_numbers<[1], [0], [0], [1], [0, 0, 1, 1], [], []>} : vector<16x32xbf16>, vector<32x128xbf16>, vector<16x128xf32> -> vector<16x128xf32>
    %95 = vector.broadcast %5 : vector<1x128xf32> to vector<16x128xf32>
    %96 = arith.addf %94, %95 : vector<16x128xf32>
    %97 = vector.extract_strided_slice %96 {offsets = [0, 0], sizes = [16, 64], strides = [1, 1]} : vector<16x128xf32> to vector<16x64xf32>
    %98 = vector.extract_strided_slice %96 {offsets = [0, 64], sizes = [16, 64], strides = [1, 1]} : vector<16x128xf32> to vector<16x64xf32>
    %cst_43 = arith.constant 5.000000e-01 : f32
    %99 = vector.broadcast %cst_43 : f32 to vector<16x64xf32>
    %100 = arith.mulf %99, %98 : vector<16x64xf32>
    %cst_44 = arith.constant 4.471500e-02 : f32
    %101 = vector.broadcast %cst_44 : f32 to vector<16x64xf32>
    %102 = arith.mulf %101, %98 : vector<16x64xf32>
    %103 = arith.mulf %102, %98 : vector<16x64xf32>
    %104 = arith.mulf %103, %98 : vector<16x64xf32>
    %105 = arith.addf %98, %104 : vector<16x64xf32>
    %cst_45 = arith.constant 0.797884583 : f32
    %106 = vector.broadcast %cst_45 : f32 to vector<16x64xf32>
    %107 = arith.mulf %106, %105 : vector<16x64xf32>
    %108 = math.tanh %107 : vector<16x64xf32>
    %cst_46 = arith.constant 1.000000e+00 : f32
    %109 = vector.broadcast %cst_46 : f32 to vector<16x64xf32>
    %110 = arith.addf %109, %108 : vector<16x64xf32>
    %111 = arith.mulf %100, %110 : vector<16x64xf32>
    %112 = arith.mulf %97, %111 : vector<16x64xf32>
    %113 = arith.truncf %112 : vector<16x64xf32> to vector<16x64xbf16>
    %c96_47 = arith.constant 96 : index
    %c0_48 = arith.constant 0 : index
    %114 = vector.load %arg3[%c96_47, %c0_48] : memref<352x128xbf16, #tpu.memory_space<vmem>>, vector<64x32xbf16>
    %cst_49 = arith.constant dense<0.000000e+00> : vector<16x32xf32>
    %115 = tpu.matmul %113, %114, %cst_49 {dimension_numbers = #tpu.dot_dimension_numbers<[1], [0], [0], [1], [0, 0, 1, 1], [], []>} : vector<16x64xbf16>, vector<64x32xbf16>, vector<16x32xf32> -> vector<16x32xf32>
    %116 = arith.addf %69, %115 : vector<16x32xf32>
    %117 = vector.broadcast %6 : vector<1x32xf32> to vector<16x32xf32>
    %118 = arith.addf %116, %117 : vector<16x32xf32>
    %c6 = arith.constant 6 : index
    %c0_50 = arith.constant 0 : index
    %119 = vector.load %arg4[%c6, %c0_50] : memref<15x128xf32, #tpu.memory_space<vmem>>, vector<1x32xf32>
    %c7 = arith.constant 7 : index
    %c0_51 = arith.constant 0 : index
    %120 = vector.load %arg4[%c7, %c0_51] : memref<15x128xf32, #tpu.memory_space<vmem>>, vector<1x32xf32>
    %c8 = arith.constant 8 : index
    %c0_52 = arith.constant 0 : index
    %121 = vector.load %arg4[%c8, %c0_52] : memref<15x128xf32, #tpu.memory_space<vmem>>, vector<1x32xf32>
    %c9 = arith.constant 9 : index
    %c0_53 = arith.constant 0 : index
    %122 = vector.load %arg4[%c9, %c0_53] : memref<15x128xf32, #tpu.memory_space<vmem>>, vector<1x32xf32>
    %c10 = arith.constant 10 : index
    %c0_54 = arith.constant 0 : index
    %123 = vector.load %arg4[%c10, %c0_54] : memref<15x128xf32, #tpu.memory_space<vmem>>, vector<1x128xf32>
    %c11 = arith.constant 11 : index
    %c0_55 = arith.constant 0 : index
    %124 = vector.load %arg4[%c11, %c0_55] : memref<15x128xf32, #tpu.memory_space<vmem>>, vector<1x32xf32>
    %cst_56 = arith.constant dense<0.000000e+00> : vector<16xf32>
    %125 = vector.multi_reduction <add>, %118, %cst_56 [1] : vector<16x32xf32> to vector<16xf32>
    %126 = vector.shape_cast %125 : vector<16xf32> to vector<16x1xf32>
    %cst_57 = arith.constant 3.200000e+01 : f32
    %127 = vector.broadcast %cst_57 : f32 to vector<16x1xf32>
    %128 = arith.divf %126, %127 : vector<16x1xf32>
    %129 = vector.broadcast %128 : vector<16x1xf32> to vector<16x32xf32>
    %130 = arith.subf %118, %129 : vector<16x32xf32>
    %131 = arith.mulf %130, %130 : vector<16x32xf32>
    %cst_58 = arith.constant dense<0.000000e+00> : vector<16xf32>
    %132 = vector.multi_reduction <add>, %131, %cst_58 [1] : vector<16x32xf32> to vector<16xf32>
    %133 = vector.shape_cast %132 : vector<16xf32> to vector<16x1xf32>
    %cst_59 = arith.constant 3.200000e+01 : f32
    %134 = vector.broadcast %cst_59 : f32 to vector<16x1xf32>
    %135 = arith.divf %133, %134 : vector<16x1xf32>
    %136 = vector.broadcast %128 : vector<16x1xf32> to vector<16x32xf32>
    %137 = arith.subf %118, %136 : vector<16x32xf32>
    %cst_60 = arith.constant 9.99999974E-6 : f32
    %138 = vector.broadcast %cst_60 : f32 to vector<16x1xf32>
    %139 = arith.addf %135, %138 : vector<16x1xf32>
    %140 = math.rsqrt %139 : vector<16x1xf32>
    %141 = vector.broadcast %140 : vector<16x1xf32> to vector<16x32xf32>
    %142 = arith.mulf %137, %141 : vector<16x32xf32>
    %143 = vector.broadcast %119 : vector<1x32xf32> to vector<16x32xf32>
    %144 = arith.mulf %142, %143 : vector<16x32xf32>
    %145 = vector.broadcast %120 : vector<1x32xf32> to vector<16x32xf32>
    %146 = arith.addf %144, %145 : vector<16x32xf32>
    %147 = arith.truncf %146 : vector<16x32xf32> to vector<16x32xbf16>
    %c160_61 = arith.constant 160 : index
    %c0_62 = arith.constant 0 : index
    %148 = vector.load %arg3[%c160_61, %c0_62] : memref<352x128xbf16, #tpu.memory_space<vmem>>, vector<32x64xbf16>
    %cst_63 = arith.constant dense<0.000000e+00> : vector<16x64xf32>
    %149 = tpu.matmul %147, %148, %cst_63 {dimension_numbers = #tpu.dot_dimension_numbers<[1], [0], [0], [1], [0, 0, 1, 1], [], []>} : vector<16x32xbf16>, vector<32x64xbf16>, vector<16x64xf32> -> vector<16x64xf32>
    %c0_64 = arith.constant 0 : index
    %c0_65 = arith.constant 0 : index
    %150 = vector.load %arg1[%c0_64, %c0_65] : memref<176x64xbf16, #tpu.memory_space<vmem>>, vector<96x16xbf16>
    %151 = arith.truncf %149 : vector<16x64xf32> to vector<16x64xbf16>
    %cst_66 = arith.constant dense<0.000000e+00> : vector<96x64xf32>
    %152 = tpu.matmul %150, %151, %cst_66 {dimension_numbers = #tpu.dot_dimension_numbers<[1], [0], [0], [1], [0, 0, 1, 1], [], []>} : vector<96x16xbf16>, vector<16x64xbf16>, vector<96x64xf32> -> vector<96x64xf32>
    %153 = vector.extract_strided_slice %152 {offsets = [0, 0], sizes = [64, 64], strides = [1, 1]} : vector<96x64xf32> to vector<64x64xf32>
    %c0_67 = arith.constant 0 : index
    %c0_68 = arith.constant 0 : index
    %154 = vector.load %arg2[%c0_67, %c0_68] : memref<224x64xf32, #tpu.memory_space<vmem>>, vector<64x64xf32>
    %155 = arith.mulf %153, %154 : vector<64x64xf32>
    %156 = vector.extract_strided_slice %152 {offsets = [64, 0], sizes = [32, 64], strides = [1, 1]} : vector<96x64xf32> to vector<32x64xf32>
    %c64_69 = arith.constant 64 : index
    %c0_70 = arith.constant 0 : index
    %157 = vector.load %arg2[%c64_69, %c0_70] : memref<224x64xf32, #tpu.memory_space<vmem>>, vector<32x64xf32>
    %158 = arith.mulf %156, %157 : vector<32x64xf32>
    %159 = arith.truncf %158 : vector<32x64xf32> to vector<32x64xbf16>
    %c96_71 = arith.constant 96 : index
    %c0_72 = arith.constant 0 : index
    %160 = vector.load %arg1[%c96_71, %c0_72] : memref<176x64xbf16, #tpu.memory_space<vmem>>, vector<64x64xbf16>
    %cst_73 = arith.constant dense<0.000000e+00> : vector<32x64xf32>
    %161 = tpu.matmul %159, %160, %cst_73 {dimension_numbers = #tpu.dot_dimension_numbers<[1], [0], [0], [1], [0, 0, 1, 1], [], []>} : vector<32x64xbf16>, vector<64x64xbf16>, vector<32x64xf32> -> vector<32x64xf32>
    %162 = arith.truncf %155 : vector<64x64xf32> to vector<64x64xbf16>
    %163 = arith.truncf %161 : vector<32x64xf32> to vector<32x64xbf16>
    %cst_74 = arith.constant dense<0.000000e+00> : vector<64x32xf32>
    %164 = tpu.matmul %162, %163, %cst_74 {dimension_numbers = #tpu.dot_dimension_numbers<[1], [1], [0], [0], [0, 0, 1, 0], [], []>} : vector<64x64xbf16>, vector<32x64xbf16>, vector<64x32xf32> -> vector<64x32xf32>
    %cst_75 = arith.constant 0.353553385 : f32
    %165 = vector.broadcast %cst_75 : f32 to vector<64x32xf32>
    %166 = arith.mulf %164, %165 : vector<64x32xf32>
    %c160_76 = arith.constant 160 : index
    %c0_77 = arith.constant 0 : index
    %167 = vector.load %arg2[%c160_76, %c0_77] : memref<224x64xf32, #tpu.memory_space<vmem>>, vector<64x32xf32>
    %168 = arith.addf %166, %167 : vector<64x32xf32>
    %169 = math.exp %168 : vector<64x32xf32>
    %cst_78 = arith.constant dense<0.000000e+00> : vector<64xf32>
    %170 = vector.multi_reduction <add>, %169, %cst_78 [1] : vector<64x32xf32> to vector<64xf32>
    %171 = vector.shape_cast %170 : vector<64xf32> to vector<64x1xf32>
    %172 = tpu.reciprocal %171 {approx = true} : vector<64x1xf32> -> vector<64x1xf32>
    %173 = vector.broadcast %172 : vector<64x1xf32> to vector<64x32xf32>
    %174 = arith.mulf %169, %173 : vector<64x32xf32>
    %175 = arith.truncf %174 : vector<64x32xf32> to vector<64x32xbf16>
    %176 = arith.truncf %161 : vector<32x64xf32> to vector<32x64xbf16>
    %cst_79 = arith.constant dense<0.000000e+00> : vector<64x64xf32>
    %177 = tpu.matmul %175, %176, %cst_79 {dimension_numbers = #tpu.dot_dimension_numbers<[1], [0], [0], [1], [0, 0, 1, 1], [], []>} : vector<64x32xbf16>, vector<32x64xbf16>, vector<64x64xf32> -> vector<64x64xf32>
    %c96_80 = arith.constant 96 : index
    %c0_81 = arith.constant 0 : index
    %178 = vector.load %arg2[%c96_80, %c0_81] : memref<224x64xf32, #tpu.memory_space<vmem>>, vector<64x64xf32>
    %179 = arith.mulf %177, %178 : vector<64x64xf32>
    %c160_82 = arith.constant 160 : index
    %c0_83 = arith.constant 0 : index
    %180 = vector.load %arg1[%c160_82, %c0_83] : memref<176x64xbf16, #tpu.memory_space<vmem>>, vector<16x64xbf16>
    %181 = arith.truncf %179 : vector<64x64xf32> to vector<64x64xbf16>
    %cst_84 = arith.constant dense<0.000000e+00> : vector<16x64xf32>
    %182 = tpu.matmul %180, %181, %cst_84 {dimension_numbers = #tpu.dot_dimension_numbers<[1], [0], [0], [1], [0, 0, 1, 1], [], []>} : vector<16x64xbf16>, vector<64x64xbf16>, vector<16x64xf32> -> vector<16x64xf32>
    %183 = vector.extract_strided_slice %182 {offsets = [0, 32], sizes = [16, 32], strides = [1, 1]} : vector<16x64xf32> to vector<16x32xf32>
    %184 = arith.truncf %183 : vector<16x32xf32> to vector<16x32xbf16>
    %c224 = arith.constant 224 : index
    %c0_85 = arith.constant 0 : index
    %185 = vector.load %arg3[%c224, %c0_85] : memref<352x128xbf16, #tpu.memory_space<vmem>>, vector<32x32xbf16>
    %cst_86 = arith.constant dense<0.000000e+00> : vector<16x32xf32>
    %186 = tpu.matmul %184, %185, %cst_86 {dimension_numbers = #tpu.dot_dimension_numbers<[1], [0], [0], [1], [0, 0, 1, 1], [], []>} : vector<16x32xbf16>, vector<32x32xbf16>, vector<16x32xf32> -> vector<16x32xf32>
    %187 = arith.addf %118, %186 : vector<16x32xf32>
    %cst_87 = arith.constant dense<0.000000e+00> : vector<16xf32>
    %188 = vector.multi_reduction <add>, %187, %cst_87 [1] : vector<16x32xf32> to vector<16xf32>
    %189 = vector.shape_cast %188 : vector<16xf32> to vector<16x1xf32>
    %cst_88 = arith.constant 3.200000e+01 : f32
    %190 = vector.broadcast %cst_88 : f32 to vector<16x1xf32>
    %191 = arith.divf %189, %190 : vector<16x1xf32>
    %192 = vector.broadcast %191 : vector<16x1xf32> to vector<16x32xf32>
    %193 = arith.subf %187, %192 : vector<16x32xf32>
    %194 = arith.mulf %193, %193 : vector<16x32xf32>
    %cst_89 = arith.constant dense<0.000000e+00> : vector<16xf32>
    %195 = vector.multi_reduction <add>, %194, %cst_89 [1] : vector<16x32xf32> to vector<16xf32>
    %196 = vector.shape_cast %195 : vector<16xf32> to vector<16x1xf32>
    %cst_90 = arith.constant 3.200000e+01 : f32
    %197 = vector.broadcast %cst_90 : f32 to vector<16x1xf32>
    %198 = arith.divf %196, %197 : vector<16x1xf32>
    %199 = vector.broadcast %191 : vector<16x1xf32> to vector<16x32xf32>
    %200 = arith.subf %187, %199 : vector<16x32xf32>
    %cst_91 = arith.constant 9.99999974E-6 : f32
    %201 = vector.broadcast %cst_91 : f32 to vector<16x1xf32>
    %202 = arith.addf %198, %201 : vector<16x1xf32>
    %203 = math.rsqrt %202 : vector<16x1xf32>
    %204 = vector.broadcast %203 : vector<16x1xf32> to vector<16x32xf32>
    %205 = arith.mulf %200, %204 : vector<16x32xf32>
    %206 = vector.broadcast %121 : vector<1x32xf32> to vector<16x32xf32>
    %207 = arith.mulf %205, %206 : vector<16x32xf32>
    %208 = vector.broadcast %122 : vector<1x32xf32> to vector<16x32xf32>
    %209 = arith.addf %207, %208 : vector<16x32xf32>
    %210 = arith.truncf %209 : vector<16x32xf32> to vector<16x32xbf16>
    %c192 = arith.constant 192 : index
    %c0_92 = arith.constant 0 : index
    %211 = vector.load %arg3[%c192, %c0_92] : memref<352x128xbf16, #tpu.memory_space<vmem>>, vector<32x128xbf16>
    %cst_93 = arith.constant dense<0.000000e+00> : vector<16x128xf32>
    %212 = tpu.matmul %210, %211, %cst_93 {dimension_numbers = #tpu.dot_dimension_numbers<[1], [0], [0], [1], [0, 0, 1, 1], [], []>} : vector<16x32xbf16>, vector<32x128xbf16>, vector<16x128xf32> -> vector<16x128xf32>
    %213 = vector.broadcast %123 : vector<1x128xf32> to vector<16x128xf32>
    %214 = arith.addf %212, %213 : vector<16x128xf32>
    %215 = vector.extract_strided_slice %214 {offsets = [0, 0], sizes = [16, 64], strides = [1, 1]} : vector<16x128xf32> to vector<16x64xf32>
    %216 = vector.extract_strided_slice %214 {offsets = [0, 64], sizes = [16, 64], strides = [1, 1]} : vector<16x128xf32> to vector<16x64xf32>
    %cst_94 = arith.constant 5.000000e-01 : f32
    %217 = vector.broadcast %cst_94 : f32 to vector<16x64xf32>
    %218 = arith.mulf %217, %216 : vector<16x64xf32>
    %cst_95 = arith.constant 4.471500e-02 : f32
    %219 = vector.broadcast %cst_95 : f32 to vector<16x64xf32>
    %220 = arith.mulf %219, %216 : vector<16x64xf32>
    %221 = arith.mulf %220, %216 : vector<16x64xf32>
    %222 = arith.mulf %221, %216 : vector<16x64xf32>
    %223 = arith.addf %216, %222 : vector<16x64xf32>
    %cst_96 = arith.constant 0.797884583 : f32
    %224 = vector.broadcast %cst_96 : f32 to vector<16x64xf32>
    %225 = arith.mulf %224, %223 : vector<16x64xf32>
    %226 = math.tanh %225 : vector<16x64xf32>
    %cst_97 = arith.constant 1.000000e+00 : f32
    %227 = vector.broadcast %cst_97 : f32 to vector<16x64xf32>
    %228 = arith.addf %227, %226 : vector<16x64xf32>
    %229 = arith.mulf %218, %228 : vector<16x64xf32>
    %230 = arith.mulf %215, %229 : vector<16x64xf32>
    %231 = arith.truncf %230 : vector<16x64xf32> to vector<16x64xbf16>
    %c256 = arith.constant 256 : index
    %c0_98 = arith.constant 0 : index
    %232 = vector.load %arg3[%c256, %c0_98] : memref<352x128xbf16, #tpu.memory_space<vmem>>, vector<64x32xbf16>
    %cst_99 = arith.constant dense<0.000000e+00> : vector<16x32xf32>
    %233 = tpu.matmul %231, %232, %cst_99 {dimension_numbers = #tpu.dot_dimension_numbers<[1], [0], [0], [1], [0, 0, 1, 1], [], []>} : vector<16x64xbf16>, vector<64x32xbf16>, vector<16x32xf32> -> vector<16x32xf32>
    %234 = arith.addf %187, %233 : vector<16x32xf32>
    %235 = vector.broadcast %124 : vector<1x32xf32> to vector<16x32xf32>
    %236 = arith.addf %234, %235 : vector<16x32xf32>
    %c12 = arith.constant 12 : index
    %c0_100 = arith.constant 0 : index
    %237 = vector.load %arg4[%c12, %c0_100] : memref<15x128xf32, #tpu.memory_space<vmem>>, vector<1x32xf32>
    %c13 = arith.constant 13 : index
    %c0_101 = arith.constant 0 : index
    %238 = vector.load %arg4[%c13, %c0_101] : memref<15x128xf32, #tpu.memory_space<vmem>>, vector<1x32xf32>
    %cst_102 = arith.constant dense<0.000000e+00> : vector<16xf32>
    %239 = vector.multi_reduction <add>, %236, %cst_102 [1] : vector<16x32xf32> to vector<16xf32>
    %240 = vector.shape_cast %239 : vector<16xf32> to vector<16x1xf32>
    %cst_103 = arith.constant 3.200000e+01 : f32
    %241 = vector.broadcast %cst_103 : f32 to vector<16x1xf32>
    %242 = arith.divf %240, %241 : vector<16x1xf32>
    %243 = vector.broadcast %242 : vector<16x1xf32> to vector<16x32xf32>
    %244 = arith.subf %236, %243 : vector<16x32xf32>
    %245 = arith.mulf %244, %244 : vector<16x32xf32>
    %cst_104 = arith.constant dense<0.000000e+00> : vector<16xf32>
    %246 = vector.multi_reduction <add>, %245, %cst_104 [1] : vector<16x32xf32> to vector<16xf32>
    %247 = vector.shape_cast %246 : vector<16xf32> to vector<16x1xf32>
    %cst_105 = arith.constant 3.200000e+01 : f32
    %248 = vector.broadcast %cst_105 : f32 to vector<16x1xf32>
    %249 = arith.divf %247, %248 : vector<16x1xf32>
    %250 = vector.broadcast %242 : vector<16x1xf32> to vector<16x32xf32>
    %251 = arith.subf %236, %250 : vector<16x32xf32>
    %cst_106 = arith.constant 9.99999974E-6 : f32
    %252 = vector.broadcast %cst_106 : f32 to vector<16x1xf32>
    %253 = arith.addf %249, %252 : vector<16x1xf32>
    %254 = math.rsqrt %253 : vector<16x1xf32>
    %255 = vector.broadcast %254 : vector<16x1xf32> to vector<16x32xf32>
    %256 = arith.mulf %251, %255 : vector<16x32xf32>
    %257 = vector.broadcast %237 : vector<1x32xf32> to vector<16x32xf32>
    %258 = arith.mulf %256, %257 : vector<16x32xf32>
    %259 = vector.broadcast %238 : vector<1x32xf32> to vector<16x32xf32>
    %260 = arith.addf %258, %259 : vector<16x32xf32>
    %261 = arith.truncf %260 : vector<16x32xf32> to vector<16x32xbf16>
    %c320 = arith.constant 320 : index
    %c0_107 = arith.constant 0 : index
    %262 = vector.load %arg3[%c320, %c0_107] : memref<352x128xbf16, #tpu.memory_space<vmem>>, vector<32x64xbf16>
    %cst_108 = arith.constant dense<0.000000e+00> : vector<16x64xf32>
    %263 = tpu.matmul %261, %262, %cst_108 {dimension_numbers = #tpu.dot_dimension_numbers<[1], [0], [0], [1], [0, 0, 1, 1], [], []>} : vector<16x32xbf16>, vector<32x64xbf16>, vector<16x64xf32> -> vector<16x64xf32>
    %c14 = arith.constant 14 : index
    %c0_109 = arith.constant 0 : index
    %264 = vector.load %arg4[%c14, %c0_109] : memref<15x128xf32, #tpu.memory_space<vmem>>, vector<1x64xf32>
    %265 = vector.broadcast %264 : vector<1x64xf32> to vector<16x64xf32>
    %266 = arith.addf %263, %265 : vector<16x64xf32>
    %c0_110 = arith.constant 0 : index
    %c0_111 = arith.constant 0 : index
    %267 = vector.load %arg5[%c0_110, %c0_111] : memref<16x64xf32, #tpu.memory_space<vmem>>, vector<16x64xf32>
    tpu.vector_store %arg5[%c0_110, %c0_111], %266 {strides = array<i32>} : memref<16x64xf32, #tpu.memory_space<vmem>>, vector<16x64xf32>,
    return
  }
}

</mosaic_0001>

<llo_original>
// kernel: decoder_model_forward.1
$region0: #{decoder_model_forward.1}
  #allocation0 [shape = 'u32[]', space=smem, size = 0x4, offset = 0x4, fixed_abs, tag = 'smem constant byte address 0x4 - core index']
  #allocation1 [shape = 'u32[144,128]{1,0:T(1,128)}', space=vmem, size = 0x12000, scoped, tag = 'internal scratch']
  %s0 = inlined_call_operand.vmem [shape: f32[16,32], index: 0, kind: input, shape index: {}]
  %s1 = inlined_call_operand.vmem [shape: bf16[176,64], index: 1, kind: input, shape index: {}]
  %s2 = inlined_call_operand.vmem [shape: f32[224,64], index: 2, kind: input, shape index: {}]
  %s3 = inlined_call_operand.vmem [shape: bf16[352,128], index: 3, kind: input, shape index: {}]
  %s4 = inlined_call_operand.vmem [shape: f32[15,128], index: 4, kind: input, shape index: {}]
  %s5 = inlined_call_operand.vmem [shape: f32[16,64], index: 5, kind: output, shape index: {}]
  %s6 = sld [smem:[#allocation0]]
  $region30: #{decoder_model_forward.1} parent=0
    _
  %s8 = ssub.s32 1, %s6
  %s9 = scalar_select 0, %s8, %s6
  // Predicated region
  $region2: #{decoder_model_forward.1} parent=0 // pred_check
    _
  $region3: #{decoder_model_forward.1} parent=0 // pred_check_branch
    %11 = sbr.rel (0) target = $region5
  $region4: #{decoder_model_forward.1} parent=0 // pred_region
    _
  $region5: #{decoder_model_forward.1} parent=0 // pred_fallthru
    _
  // Predicated region
  $region6: #{decoder_model_forward.1} parent=0 // pred_check
    _
  $region7: #{decoder_model_forward.1} parent=0 // pred_check_branch
    %13 = sbr.rel (0) target = $region9
  $region8: #{decoder_model_forward.1} parent=0 // pred_region
    _
  $region9: #{decoder_model_forward.1} parent=0 // pred_fallthru
    _
  // Predicated region
  $region10: #{decoder_model_forward.1} parent=0 // pred_check
    _
  $region11: #{decoder_model_forward.1} parent=0 // pred_check_branch
    %15 = sbr.rel (0) target = $region13
  $region12: #{decoder_model_forward.1} parent=0 // pred_region
    _
  $region13: #{decoder_model_forward.1} parent=0 // pred_fallthru
    _
  // Predicated region
  $region14: #{decoder_model_forward.1} parent=0 // pred_check
    _
  $region15: #{decoder_model_forward.1} parent=0 // pred_check_branch
    %17 = sbr.rel (0) target = $region17
  $region16: #{decoder_model_forward.1} parent=0 // pred_region
    _
  $region17: #{decoder_model_forward.1} parent=0 // pred_fallthru
    _
  // Predicated region
  $region18: #{decoder_model_forward.1} parent=0 // pred_check
    _
  $region19: #{decoder_model_forward.1} parent=0 // pred_check_branch
    %19 = sbr.rel (0) target = $region21
  $region20: #{decoder_model_forward.1} parent=0 // pred_region
    _
  $region21: #{decoder_model_forward.1} parent=0 // pred_fallthru
    _
  %v21 = vld [vmem:[%s0] sm:$0xff]
  %v22 = vld [vmem:[%s0 + $0x8] sm:$0xff]
  %v23 = vld [vmem:[%s4] sm:$0x1]
  %v24 = vld [vmem:[%s4 + $0x1] sm:$0x1]
  %v25 = vld [vmem:[%s4 + $0x2] sm:$0x1]
  %v26 = vld [vmem:[%s4 + $0x3] sm:$0x1]
  %v27 = vld [vmem:[%s4 + $0x4] sm:$0x1]
  %v28 = vld [vmem:[%s4 + $0x5] sm:$0x1]
  %vm29 = vcmask 261120
  %v30 = vsel %vm29, %v21, 0.0
  %31 = vadd.xlane.f32.xlu0 %v30
  %v32 = vpop.xlane.xlu0 %31
  %v33 = vsel %vm29, %v22, 0.0
  %34 = vadd.xlane.f32.xlu0 %v33
  %v35 = vpop.xlane.xlu0 %34
  %v36 = vrcp.pop 32.0
  %v37 = vmul.f32 %v32, %v36
  %v38 = vmul.f32 %v35, %v36
  %v39 = vsub.f32 %v21, %v37
  %v40 = vsub.f32 %v22, %v38
  %v41 = vmul.f32 %v39, %v39
  %v42 = vmul.f32 %v40, %v40
  %v43 = vsel %vm29, %v41, 0.0
  %44 = vadd.xlane.f32.xlu0 %v43
  %v45 = vpop.xlane.xlu0 %44
  %v46 = vsel %vm29, %v42, 0.0
  %47 = vadd.xlane.f32.xlu0 %v46
  %v48 = vpop.xlane.xlu0 %47
  %v49 = vmul.f32 %v45, %v36
  %v50 = vmul.f32 %v48, %v36
  %v51 = vadd.f32 %v49, 1e-05
  %v52 = vadd.f32 %v50, 1e-05
  %v53 = vrsqrt.pop %v51
  %v54 = vrsqrt.pop %v52
  %v55 = vmul.f32 %v39, %v53
  %v56 = vmul.f32 %v40, %v54
  %v57 = vlaneseq
  %v58 = vshrl.u32 %v57, 7
  %v59 = vsub.s32 0, %v58
  %v60 = vrot.slane %v23, %v59
  %v61 = vmul.f32 %v55, %v60
  %v62 = vmul.f32 %v56, %v60
  %v63 = vlaneseq
  %v64 = vshrl.u32 %v63, 7
  %v65 = vsub.s32 0, %v64
  %v66 = vrot.slane %v24, %v65
  %v67 = vadd.f32 %v61, %v66
  %v68 = vadd.f32 %v62, %v66
  %v69 = vpack.c.bf16 %v68, %v67
  %v70 = vld [vmem:[%s3] sm:$0xf]
  %v71 = vld [vmem:[%s3 + $0x4] sm:$0xf]
  %v72 = vld [vmem:[%s3 + $0x8] sm:$0xf]
  %v73 = vld [vmem:[%s3 + $0xc] sm:$0xf]
  %v78 = vunpack.c.l.b16 %v70
  %v79 = vunpack.c.l.b16 %v71
  %v80 = vunpack.c.l.b16 %v72
  %v81 = vunpack.c.l.b16 %v73
  %v82 = vpack.c.b16 %v79, %v78
  %v83 = vpack.c.b16 %v81, %v80
  %v87 = vsel %vm29, %v69, 0
  %89 = vmatprep.subr.bf16.mxu0 0
  %90 = vmatpush1.bf16.msra.mxu0 %v82
  %91 = vmatprep.subr.bf16.mxu0 0
  %92 = vmatpush1.bf16.msra.mxu0 %v83
  %93 = vmatprep.subr.bf16.mxu0 0
  %94 = vmatpush1.bf16.msra.mxu0 0
  %95 = vmatprep.subr.bf16.mxu0 0
  %96 = vmatpush1.bf16.msra.mxu0 0
  %97 = vmatprep.subr.bf16.mxu0 0
  %98 = vmatpush1.bf16.msra.mxu0 0
  %99 = vmatprep.subr.bf16.mxu0 0
  %100 = vmatpush1.bf16.msra.mxu0 0
  %101 = vmatprep.subr.bf16.mxu0 0
  %102 = vmatpush1.bf16.msra.mxu0 0
  %103 = vmatprep.subr.bf16.mxu0 0
  %104 = vmatpush1.bf16.msra.mxu0 0
  %105 = vmatprep.subr.bf16.mxu0 0
  %106 = vmatpush1.bf16.msra.mxu0 0
  %107 = vmatprep.subr.bf16.mxu0 0
  %108 = vmatpush1.bf16.msra.mxu0 0
  %109 = vmatprep.subr.bf16.mxu0 0
  %110 = vmatpush1.bf16.msra.mxu0 0
  %111 = vmatprep.subr.bf16.mxu0 0
  %112 = vmatpush1.bf16.msra.mxu0 0
  %113 = vmatprep.subr.bf16.mxu0 0
  %114 = vmatpush1.bf16.msra.mxu0 0
  %115 = vmatprep.subr.bf16.mxu0 0
  %116 = vmatpush1.bf16.msra.mxu0 0
  %117 = vmatprep.subr.bf16.mxu0 0
  %118 = vmatpush1.bf16.msra.mxu0 0
  %119 = vmatprep.subr.bf16.mxu0 0
  %120 = vmatpush1.bf16.msra.mxu0 0
  %121 = vmatprep.mubr.bf16.mxu0 0
  %122 = vmatmul.mubr.bf16.gmra.mrb[0].mxu0 %v87
  %v123 = vpop.f32.mrb[0].mxu0
  %v124 = vadd.f32 0.0, %v123
  %v125 = vpop.f32.mrb[0].mxu0
  %v126 = vpop.f32.mrb[0].mxu0
  %v127 = vadd.f32 0.0, %v126
  %v128 = vpop.f32.mrb[0].mxu0
  %129 = vdwg.mxu0
  %v130 = vld [vmem:[%s1] sm:$0xf]
  %v131 = vld [vmem:[%s1 + $0x4] sm:$0xf]
  %v132 = vld [vmem:[%s1 + $0x8] sm:$0xf]
  %v133 = vld [vmem:[%s1 + $0xc] sm:$0xf]
  %v134 = vld [vmem:[%s1 + $0x10] sm:$0xf]
  %v135 = vld [vmem:[%s1 + $0x14] sm:$0xf]
  %v136 = vld [vmem:[%s1 + $0x18] sm:$0xf]
  %v137 = vld [vmem:[%s1 + $0x1c] sm:$0xf]
  %v138 = vld [vmem:[%s1 + $0x20] sm:$0xf]
  %v139 = vld [vmem:[%s1 + $0x24] sm:$0xf]
  %v140 = vld [vmem:[%s1 + $0x28] sm:$0xf]
  %v141 = vld [vmem:[%s1 + $0x2c] sm:$0xf]
  %v142 = vpack.c.bf16 %v127, %v124
  %v155 = vunpack.c.l.b16 %v130
  %v156 = vunpack.c.l.b16 %v131
  %v157 = vunpack.c.l.b16 %v132
  %v158 = vunpack.c.l.b16 %v133
  %v159 = vunpack.c.l.b16 %v134
  %v160 = vunpack.c.l.b16 %v135
  %v161 = vunpack.c.l.b16 %v136
  %v162 = vunpack.c.l.b16 %v137
  %v163 = vunpack.c.l.b16 %v138
  %v164 = vunpack.c.l.b16 %v139
  %v165 = vunpack.c.l.b16 %v140
  %v166 = vunpack.c.l.b16 %v141
  %v167 = vpack.c.b16 %v156, %v155
  %v168 = vpack.c.b16 %v158, %v157
  %v169 = vpack.c.b16 %v160, %v159
  %v170 = vpack.c.b16 %v162, %v161
  %v171 = vpack.c.b16 %v164, %v163
  %v172 = vpack.c.b16 %v166, %v165
  %vm173 = vcmask 130048
  %v175 = vsel %vm173, %v167, 0
  %v178 = vsel %vm173, %v168, 0
  %v181 = vsel %vm173, %v169, 0
  %v184 = vsel %vm173, %v170, 0
  %v187 = vsel %vm173, %v171, 0
  %v190 = vsel %vm173, %v172, 0
  %192 = vmatprep.subr.bf16.mxu0 0
  %193 = vmatpush1.bf16.msra.mxu0 %v142
  %194 = vmatprep.subr.bf16.mxu0 0
  %195 = vmatpush1.bf16.msra.mxu0 0
  %196 = vmatprep.subr.bf16.mxu0 0
  %197 = vmatpush1.bf16.msra.mxu0 0
  %198 = vmatprep.subr.bf16.mxu0 0
  %199 = vmatpush1.bf16.msra.mxu0 0
  %200 = vmatprep.subr.bf16.mxu0 0
  %201 = vmatpush1.bf16.msra.mxu0 0
  %202 = vmatprep.subr.bf16.mxu0 0
  %203 = vmatpush1.bf16.msra.mxu0 0
  %204 = vmatprep.subr.bf16.mxu0 0
  %205 = vmatpush1.bf16.msra.mxu0 0
  %206 = vmatprep.subr.bf16.mxu0 0
  %207 = vmatpush1.bf16.msra.mxu0 0
  %208 = vmatprep.subr.bf16.mxu0 0
  %209 = vmatpush1.bf16.msra.mxu0 0
  %210 = vmatprep.subr.bf16.mxu0 0
  %211 = vmatpush1.bf16.msra.mxu0 0
  %212 = vmatprep.subr.bf16.mxu0 0
  %213 = vmatpush1.bf16.msra.mxu0 0
  %214 = vmatprep.subr.bf16.mxu0 0
  %215 = vmatpush1.bf16.msra.mxu0 0
  %216 = vmatprep.subr.bf16.mxu0 0
  %217 = vmatpush1.bf16.msra.mxu0 0
  %218 = vmatprep.subr.bf16.mxu0 0
  %219 = vmatpush1.bf16.msra.mxu0 0
  %220 = vmatprep.subr.bf16.mxu0 0
  %221 = vmatpush1.bf16.msra.mxu0 0
  %222 = vmatprep.subr.bf16.mxu0 0
  %223 = vmatpush1.bf16.msra.mxu0 0
  %224 = vmatprep.mubr.bf16.mxu0 0
  %225 = vmatmul.mubr.bf16.gmra.mrb[0].mxu0 %v175
  %v226 = vpop.f32.mrb[0].mxu0
  %v227 = vadd.f32 0.0, %v226
  %v228 = vpop.f32.mrb[0].mxu0
  %v229 = vpop.f32.mrb[0].mxu0
  %v230 = vadd.f32 0.0, %v229
  %v231 = vpop.f32.mrb[0].mxu0
  %232 = vmatprep.mubr.bf16.mxu0 0
  %233 = vmatmul.mubr.bf16.gmra.mrb[0].mxu0 %v178
  %v234 = vpop.f32.mrb[0].mxu0
  %v235 = vadd.f32 0.0, %v234
  %v236 = vpop.f32.mrb[0].mxu0
  %v237 = vpop.f32.mrb[0].mxu0
  %v238 = vadd.f32 0.0, %v237
  %v239 = vpop.f32.mrb[0].mxu0
  %240 = vmatprep.mubr.bf16.mxu0 0
  %241 = vmatmul.mubr.bf16.gmra.mrb[0].mxu0 %v181
  %v242 = vpop.f32.mrb[0].mxu0
  %v243 = vadd.f32 0.0, %v242
  %v244 = vpop.f32.mrb[0].mxu0
  %v245 = vpop.f32.mrb[0].mxu0
  %v246 = vadd.f32 0.0, %v245
  %v247 = vpop.f32.mrb[0].mxu0
  %248 = vmatprep.mubr.bf16.mxu0 0
  %249 = vmatmul.mubr.bf16.gmra.mrb[0].mxu0 %v184
  %v250 = vpop.f32.mrb[0].mxu0
  %v251 = vadd.f32 0.0, %v250
  %v252 = vpop.f32.mrb[0].mxu0
  %v253 = vpop.f32.mrb[0].mxu0
  %v254 = vadd.f32 0.0, %v253
  %v255 = vpop.f32.mrb[0].mxu0
  %256 = vmatprep.mubr.bf16.mxu0 0
  %257 = vmatmul.mubr.bf16.gmra.mrb[0].mxu0 %v187
  %v258 = vpop.f32.mrb[0].mxu0
  %v259 = vadd.f32 0.0, %v258
  %v260 = vpop.f32.mrb[0].mxu0
  %v261 = vpop.f32.mrb[0].mxu0
  %v262 = vadd.f32 0.0, %v261
  %v263 = vpop.f32.mrb[0].mxu0
  %264 = vmatprep.mubr.bf16.mxu0 0
  %265 = vmatmul.mubr.bf16.gmra.mrb[0].mxu0 %v190
  %v266 = vpop.f32.mrb[0].mxu0
  %v267 = vadd.f32 0.0, %v266
  %v268 = vpop.f32.mrb[0].mxu0
  %v269 = vpop.f32.mrb[0].mxu0
  %v270 = vadd.f32 0.0, %v269
  %v271 = vpop.f32.mrb[0].mxu0
  %272 = vdwg.mxu0
  %v273 = vld [vmem:[%s2] sm:$0xff]
  %v274 = vld [vmem:[%s2 + $0x8] sm:$0xff]
  %v275 = vld [vmem:[%s2 + $0x10] sm:$0xff]
  %v276 = vld [vmem:[%s2 + $0x18] sm:$0xff]
  %v277 = vld [vmem:[%s2 + $0x20] sm:$0xff]
  %v278 = vld [vmem:[%s2 + $0x28] sm:$0xff]
  %v279 = vld [vmem:[%s2 + $0x30] sm:$0xff]
  %v280 = vld [vmem:[%s2 + $0x38] sm:$0xff]
  %v281 = vmul.f32 %v227, %v273
  %v282 = vmul.f32 %v230, %v274
  %v283 = vmul.f32 %v235, %v275
  %v284 = vmul.f32 %v238, %v276
  %v285 = vmul.f32 %v243, %v277
  %v286 = vmul.f32 %v246, %v278
  %v287 = vmul.f32 %v251, %v279
  %v288 = vmul.f32 %v254, %v280
  %v289 = vld [vmem:[%s2 + $0x40] sm:$0xff]
  %v290 = vld [vmem:[%s2 + $0x48] sm:$0xff]
  %v291 = vld [vmem:[%s2 + $0x50] sm:$0xff]
  %v292 = vld [vmem:[%s2 + $0x58] sm:$0xff]
  %v293 = vmul.f32 %v259, %v289
  %v294 = vmul.f32 %v262, %v290
  %v295 = vmul.f32 %v267, %v291
  %v296 = vmul.f32 %v270, %v292
  %v297 = vpack.c.bf16 %v294, %v293
  %v298 = vpack.c.bf16 %v296, %v295
  %v299 = vld [vmem:[%s1 + $0x30] sm:$0xf]
  %v300 = vld [vmem:[%s1 + $0x34] sm:$0xf]
  %v301 = vld [vmem:[%s1 + $0x38] sm:$0xf]
  %v302 = vld [vmem:[%s1 + $0x3c] sm:$0xf]
  %v303 = vld [vmem:[%s1 + $0x40] sm:$0xf]
  %v304 = vld [vmem:[%s1 + $0x44] sm:$0xf]
  %v305 = vld [vmem:[%s1 + $0x48] sm:$0xf]
  %v306 = vld [vmem:[%s1 + $0x4c] sm:$0xf]
  %v315 = vunpack.c.l.b16 %v299
  %v316 = vunpack.c.l.b16 %v300
  %v317 = vunpack.c.l.b16 %v301
  %v318 = vunpack.c.l.b16 %v302
  %v319 = vunpack.c.l.b16 %v303
  %v320 = vunpack.c.l.b16 %v304
  %v321 = vunpack.c.l.b16 %v305
  %v322 = vunpack.c.l.b16 %v306
  %v323 = vpack.c.b16 %v316, %v315
  %v324 = vpack.c.b16 %v318, %v317
  %v325 = vpack.c.b16 %v320, %v319
  %v326 = vpack.c.b16 %v322, %v321
  %vm331 = vcmask 523264
  %v333 = vsel %vm331, %v297, 0
  %v336 = vsel %vm331, %v298, 0
  %338 = vmatprep.subr.bf16.mxu0 0
  %339 = vmatpush1.bf16.msra.mxu0 %v323
  %340 = vmatprep.subr.bf16.mxu0 0
  %341 = vmatpush1.bf16.msra.mxu0 %v324
  %342 = vmatprep.subr.bf16.mxu0 0
  %343 = vmatpush1.bf16.msra.mxu0 %v325
  %344 = vmatprep.subr.bf16.mxu0 0
  %345 = vmatpush1.bf16.msra.mxu0 %v326
  %346 = vmatprep.subr.bf16.mxu0 0
  %347 = vmatpush1.bf16.msra.mxu0 0
  %348 = vmatprep.subr.bf16.mxu0 0
  %349 = vmatpush1.bf16.msra.mxu0 0
  %350 = vmatprep.subr.bf16.mxu0 0
  %351 = vmatpush1.bf16.msra.mxu0 0
  %352 = vmatprep.subr.bf16.mxu0 0
  %353 = vmatpush1.bf16.msra.mxu0 0
  %354 = vmatprep.subr.bf16.mxu0 0
  %355 = vmatpush1.bf16.msra.mxu0 0
  %356 = vmatprep.subr.bf16.mxu0 0
  %357 = vmatpush1.bf16.msra.mxu0 0
  %358 = vmatprep.subr.bf16.mxu0 0
  %359 = vmatpush1.bf16.msra.mxu0 0
  %360 = vmatprep.subr.bf16.mxu0 0
  %361 = vmatpush1.bf16.msra.mxu0 0
  %362 = vmatprep.subr.bf16.mxu0 0
  %363 = vmatpush1.bf16.msra.mxu0 0
  %364 = vmatprep.subr.bf16.mxu0 0
  %365 = vmatpush1.bf16.msra.mxu0 0
  %366 = vmatprep.subr.bf16.mxu0 0
  %367 = vmatpush1.bf16.msra.mxu0 0
  %368 = vmatprep.subr.bf16.mxu0 0
  %369 = vmatpush1.bf16.msra.mxu0 0
  %370 = vmatprep.mubr.bf16.mxu0 0
  %371 = vmatmul.mubr.bf16.gmra.mrb[0].mxu0 %v333
  %v372 = vpop.f32.mrb[0].mxu0
  %v373 = vadd.f32 0.0, %v372
  %v374 = vpop.f32.mrb[0].mxu0
  %v375 = vpop.f32.mrb[0].mxu0
  %v376 = vadd.f32 0.0, %v375
  %v377 = vpop.f32.mrb[0].mxu0
  %378 = vmatprep.mubr.bf16.mxu0 0
  %379 = vmatmul.mubr.bf16.gmra.mrb[0].mxu0 %v336
  %v380 = vpop.f32.mrb[0].mxu0
  %v381 = vadd.f32 0.0, %v380
  %v382 = vpop.f32.mrb[0].mxu0
  %v383 = vpop.f32.mrb[0].mxu0
  %v384 = vadd.f32 0.0, %v383
  %v385 = vpop.f32.mrb[0].mxu0
  %386 = vdwg.mxu0
  %v387 = vpack.c.bf16 %v282, %v281
  %v388 = vpack.c.bf16 %v284, %v283
  %v389 = vpack.c.bf16 %v286, %v285
  %v390 = vpack.c.bf16 %v288, %v287
  %v391 = vpack.c.bf16 %v376, %v373
  %v392 = vpack.c.bf16 %v384, %v381
  %v394 = vsel %vm331, %v387, 0
  %v397 = vsel %vm331, %v388, 0
  %v400 = vsel %vm331, %v389, 0
  %v403 = vsel %vm331, %v390, 0
  %v406 = vsel %vm331, %v391, 0
  %v409 = vsel %vm331, %v392, 0
  %411 = vmatprep.subr.bf16.mxu0 0
  %412 = vmatpush1.bf16.xpose.msra.mxu0 %v406
  %413 = vmatprep.subr.bf16.mxu0 0
  %414 = vmatpush1.bf16.xpose.msra.mxu0 %v409
  %415 = vmatprep.subr.bf16.mxu0 0
  %416 = vmatpush1.bf16.xpose.msra.mxu0 0
  %417 = vmatprep.subr.bf16.mxu0 0
  %418 = vmatpush1.bf16.xpose.msra.mxu0 0
  %419 = vmatprep.subr.bf16.mxu0 0
  %420 = vmatpush1.bf16.xpose.msra.mxu0 0
  %421 = vmatprep.subr.bf16.mxu0 0
  %422 = vmatpush1.bf16.xpose.msra.mxu0 0
  %423 = vmatprep.subr.bf16.mxu0 0
  %424 = vmatpush1.bf16.xpose.msra.mxu0 0
  %425 = vmatprep.subr.bf16.mxu0 0
  %426 = vmatpush1.bf16.xpose.msra.mxu0 0
  %427 = vmatprep.subr.bf16.mxu0 0
  %428 = vmatpush1.bf16.xpose.msra.mxu0 0
  %429 = vmatprep.subr.bf16.mxu0 0
  %430 = vmatpush1.bf16.xpose.msra.mxu0 0
  %431 = vmatprep.subr.bf16.mxu0 0
  %432 = vmatpush1.bf16.xpose.msra.mxu0 0
  %433 = vmatprep.subr.bf16.mxu0 0
  %434 = vmatpush1.bf16.xpose.msra.mxu0 0
  %435 = vmatprep.subr.bf16.mxu0 0
  %436 = vmatpush1.bf16.xpose.msra.mxu0 0
  %437 = vmatprep.subr.bf16.mxu0 0
  %438 = vmatpush1.bf16.xpose.msra.mxu0 0
  %439 = vmatprep.subr.bf16.mxu0 0
  %440 = vmatpush1.bf16.xpose.msra.mxu0 0
  %441 = vmatprep.subr.bf16.mxu0 0
  %442 = vmatpush1.bf16.xpose.msra.mxu0 0
  %443 = vmatprep.mubr.bf16.mxu0 0
  %444 = vmatmul.mubr.bf16.gmra.mrb[0].mxu0 %v394
  %v445 = vpop.f32.mrb[0].mxu0
  %v446 = vadd.f32 0.0, %v445
  %v447 = vpop.f32.mrb[0].mxu0
  %v448 = vpop.f32.mrb[0].mxu0
  %v449 = vadd.f32 0.0, %v448
  %v450 = vpop.f32.mrb[0].mxu0
  %451 = vmatprep.mubr.bf16.mxu0 0
  %452 = vmatmul.mubr.bf16.gmra.mrb[0].mxu0 %v397
  %v453 = vpop.f32.mrb[0].mxu0
  %v454 = vadd.f32 0.0, %v453
  %v455 = vpop.f32.mrb[0].mxu0
  %v456 = vpop.f32.mrb[0].mxu0
  %v457 = vadd.f32 0.0, %v456
  %v458 = vpop.f32.mrb[0].mxu0
  %459 = vmatprep.mubr.bf16.mxu0 0
  %460 = vmatmul.mubr.bf16.gmra.mrb[0].mxu0 %v400
  %v461 = vpop.f32.mrb[0].mxu0
  %v462 = vadd.f32 0.0, %v461
  %v463 = vpop.f32.mrb[0].mxu0
  %v464 = vpop.f32.mrb[0].mxu0
  %v465 = vadd.f32 0.0, %v464
  %v466 = vpop.f32.mrb[0].mxu0
  %467 = vmatprep.mubr.bf16.mxu0 0
  %468 = vmatmul.mubr.bf16.gmra.mrb[0].mxu0 %v403
  %v469 = vpop.f32.mrb[0].mxu0
  %v470 = vadd.f32 0.0, %v469
  %v471 = vpop.f32.mrb[0].mxu0
  %v472 = vpop.f32.mrb[0].mxu0
  %v473 = vadd.f32 0.0, %v472
  %v474 = vpop.f32.mrb[0].mxu0
  %475 = vdwg.mxu0
  %v476 = vmul.f32 %v446, 0.35355338
  %v477 = vmul.f32 %v449, 0.35355338
  %v478 = vmul.f32 %v454, 0.35355338
  %v479 = vmul.f32 %v457, 0.35355338
  %v480 = vmul.f32 %v462, 0.35355338
  %v481 = vmul.f32 %v465, 0.35355338
  %v482 = vmul.f32 %v470, 0.35355338
  %v483 = vmul.f32 %v473, 0.35355338
  %v484 = vld [vmem:[%s2 + $0xa0] sm:$0xff]
  %v485 = vld [vmem:[%s2 + $0xa8] sm:$0xff]
  %v486 = vld [vmem:[%s2 + $0xb0] sm:$0xff]
  %v487 = vld [vmem:[%s2 + $0xb8] sm:$0xff]
  %v488 = vld [vmem:[%s2 + $0xc0] sm:$0xff]
  %v489 = vld [vmem:[%s2 + $0xc8] sm:$0xff]
  %v490 = vld [vmem:[%s2 + $0xd0] sm:$0xff]
  %v491 = vld [vmem:[%s2 + $0xd8] sm:$0xff]
  %v492 = vadd.f32 %v476, %v484
  %v493 = vadd.f32 %v477, %v485
  %v494 = vadd.f32 %v478, %v486
  %v495 = vadd.f32 %v479, %v487
  %v496 = vadd.f32 %v480, %v488
  %v497 = vadd.f32 %v481, %v489
  %v498 = vadd.f32 %v482, %v490
  %v499 = vadd.f32 %v483, %v491
  %v500 = vmul.f32 %v492, 1.442695
  %v501 = vpow.pop %v500
  %v502 = vmul.f32 %v493, 1.442695
  %v503 = vpow.pop %v502
  %v504 = vmul.f32 %v494, 1.442695
  %v505 = vpow.pop %v504
  %v506 = vmul.f32 %v495, 1.442695
  %v507 = vpow.pop %v506
  %v508 = vmul.f32 %v496, 1.442695
  %v509 = vpow.pop %v508
  %v510 = vmul.f32 %v497, 1.442695
  %v511 = vpow.pop %v510
  %v512 = vmul.f32 %v498, 1.442695
  %v513 = vpow.pop %v512
  %v514 = vmul.f32 %v499, 1.442695
  %v515 = vpow.pop %v514
  %v516 = vsel %vm29, %v501, 0.0
  %517 = vadd.xlane.f32.xlu0 %v516
  %v518 = vpop.xlane.xlu0 %517
  %v519 = vsel %vm29, %v503, 0.0
  %520 = vadd.xlane.f32.xlu0 %v519
  %v521 = vpop.xlane.xlu0 %520
  %v522 = vsel %vm29, %v505, 0.0
  %523 = vadd.xlane.f32.xlu0 %v522
  %v524 = vpop.xlane.xlu0 %523
  %v525 = vsel %vm29, %v507, 0.0
  %526 = vadd.xlane.f32.xlu0 %v525
  %v527 = vpop.xlane.xlu0 %526
  %v528 = vsel %vm29, %v509, 0.0
  %529 = vadd.xlane.f32.xlu0 %v528
  %v530 = vpop.xlane.xlu0 %529
  %v531 = vsel %vm29, %v511, 0.0
  %532 = vadd.xlane.f32.xlu0 %v531
  %v533 = vpop.xlane.xlu0 %532
  %v534 = vsel %vm29, %v513, 0.0
  %535 = vadd.xlane.f32.xlu0 %v534
  %v536 = vpop.xlane.xlu0 %535
  %v537 = vsel %vm29, %v515, 0.0
  %538 = vadd.xlane.f32.xlu0 %v537
  %v539 = vpop.xlane.xlu0 %538
  %v540 = vrcp.pop %v518
  %v541 = vrcp.pop %v521
  %v542 = vrcp.pop %v524
  %v543 = vrcp.pop %v527
  %v544 = vrcp.pop %v530
  %v545 = vrcp.pop %v533
  %v546 = vrcp.pop %v536
  %v547 = vrcp.pop %v539
  %v548 = vmul.f32 %v501, %v540
  %v549 = vmul.f32 %v503, %v541
  %v550 = vmul.f32 %v505, %v542
  %v551 = vmul.f32 %v507, %v543
  %v552 = vmul.f32 %v509, %v544
  %v553 = vmul.f32 %v511, %v545
  %v554 = vmul.f32 %v513, %v546
  %v555 = vmul.f32 %v515, %v547
  %v556 = vpack.c.bf16 %v549, %v548
  %v557 = vpack.c.bf16 %v551, %v550
  %v558 = vpack.c.bf16 %v553, %v552
  %v559 = vpack.c.bf16 %v555, %v554
  %v561 = vsel %vm29, %v556, 0
  %v564 = vsel %vm29, %v557, 0
  %v567 = vsel %vm29, %v558, 0
  %v570 = vsel %vm29, %v559, 0
  %572 = vmatprep.subr.bf16.mxu0 0
  %573 = vmatpush1.bf16.msra.mxu0 %v391
  %574 = vmatprep.subr.bf16.mxu0 0
  %575 = vmatpush1.bf16.msra.mxu0 %v392
  %576 = vmatprep.subr.bf16.mxu0 0
  %577 = vmatpush1.bf16.msra.mxu0 0
  %578 = vmatprep.subr.bf16.mxu0 0
  %579 = vmatpush1.bf16.msra.mxu0 0
  %580 = vmatprep.subr.bf16.mxu0 0
  %581 = vmatpush1.bf16.msra.mxu0 0
  %582 = vmatprep.subr.bf16.mxu0 0
  %583 = vmatpush1.bf16.msra.mxu0 0
  %584 = vmatprep.subr.bf16.mxu0 0
  %585 = vmatpush1.bf16.msra.mxu0 0
  %586 = vmatprep.subr.bf16.mxu0 0
  %587 = vmatpush1.bf16.msra.mxu0 0
  %588 = vmatprep.subr.bf16.mxu0 0
  %589 = vmatpush1.bf16.msra.mxu0 0
  %590 = vmatprep.subr.bf16.mxu0 0
  %591 = vmatpush1.bf16.msra.mxu0 0
  %592 = vmatprep.subr.bf16.mxu0 0
  %593 = vmatpush1.bf16.msra.mxu0 0
  %594 = vmatprep.subr.bf16.mxu0 0
  %595 = vmatpush1.bf16.msra.mxu0 0
  %596 = vmatprep.subr.bf16.mxu0 0
  %597 = vmatpush1.bf16.msra.mxu0 0
  %598 = vmatprep.subr.bf16.mxu0 0
  %599 = vmatpush1.bf16.msra.mxu0 0
  %600 = vmatprep.subr.bf16.mxu0 0
  %601 = vmatpush1.bf16.msra.mxu0 0
  %602 = vmatprep.subr.bf16.mxu0 0
  %603 = vmatpush1.bf16.msra.mxu0 0
  %604 = vmatprep.mubr.bf16.mxu0 0
  %605 = vmatmul.mubr.bf16.gmra.mrb[0].mxu0 %v561
  %v606 = vpop.f32.mrb[0].mxu0
  %v607 = vadd.f32 0.0, %v606
  %v608 = vpop.f32.mrb[0].mxu0
  %v609 = vpop.f32.mrb[0].mxu0
  %v610 = vadd.f32 0.0, %v609
  %v611 = vpop.f32.mrb[0].mxu0
  %612 = vmatprep.mubr.bf16.mxu0 0
  %613 = vmatmul.mubr.bf16.gmra.mrb[0].mxu0 %v564
  %v614 = vpop.f32.mrb[0].mxu0
  %v615 = vadd.f32 0.0, %v614
  %v616 = vpop.f32.mrb[0].mxu0
  %v617 = vpop.f32.mrb[0].mxu0
  %v618 = vadd.f32 0.0, %v617
  %v619 = vpop.f32.mrb[0].mxu0
  %620 = vmatprep.mubr.bf16.mxu0 0
  %621 = vmatmul.mubr.bf16.gmra.mrb[0].mxu0 %v567
  %v622 = vpop.f32.mrb[0].mxu0
  %v623 = vadd.f32 0.0, %v622
  %v624 = vpop.f32.mrb[0].mxu0
  %v625 = vpop.f32.mrb[0].mxu0
  %v626 = vadd.f32 0.0, %v625
  %v627 = vpop.f32.mrb[0].mxu0
  %628 = vmatprep.mubr.bf16.mxu0 0
  %629 = vmatmul.mubr.bf16.gmra.mrb[0].mxu0 %v570
  %v630 = vpop.f32.mrb[0].mxu0
  %v631 = vadd.f32 0.0, %v630
  %v632 = vpop.f32.mrb[0].mxu0
  %v633 = vpop.f32.mrb[0].mxu0
  %v634 = vadd.f32 0.0, %v633
  %v635 = vpop.f32.mrb[0].mxu0
  %636 = vdwg.mxu0
  %v637 = vld [vmem:[%s2 + $0x60] sm:$0xff]
  %v638 = vld [vmem:[%s2 + $0x68] sm:$0xff]
  %v639 = vld [vmem:[%s2 + $0x70] sm:$0xff]
  %v640 = vld [vmem:[%s2 + $0x78] sm:$0xff]
  %v641 = vld [vmem:[%s2 + $0x80] sm:$0xff]
  %v642 = vld [vmem:[%s2 + $0x88] sm:$0xff]
  %v643 = vld [vmem:[%s2 + $0x90] sm:$0xff]
  %v644 = vld [vmem:[%s2 + $0x98] sm:$0xff]
  %v645 = vmul.f32 %v607, %v637
  %v646 = vmul.f32 %v610, %v638
  %v647 = vmul.f32 %v615, %v639
  %v648 = vmul.f32 %v618, %v640
  %v649 = vmul.f32 %v623, %v641
  %v650 = vmul.f32 %v626, %v642
  %v651 = vmul.f32 %v631, %v643
  %v652 = vmul.f32 %v634, %v644
  %v653 = vld [vmem:[%s1 + $0x50] sm:$0xf]
  %v654 = vld [vmem:[%s1 + $0x54] sm:$0xf]
  %v655 = vpack.c.bf16 %v646, %v645
  %v656 = vpack.c.bf16 %v648, %v647
  %v657 = vpack.c.bf16 %v650, %v649
  %v658 = vpack.c.bf16 %v652, %v651
  %v661 = vunpack.c.l.b16 %v653
  %v662 = vunpack.c.l.b16 %v654
  %v663 = vpack.c.b16 %v662, %v661
  %v665 = vsel %vm331, %v663, 0
  %667 = vmatprep.subr.bf16.mxu0 0
  %668 = vmatpush1.bf16.msra.mxu0 %v655
  %669 = vmatprep.subr.bf16.mxu0 0
  %670 = vmatpush1.bf16.msra.mxu0 %v656
  %671 = vmatprep.subr.bf16.mxu0 0
  %672 = vmatpush1.bf16.msra.mxu0 %v657
  %673 = vmatprep.subr.bf16.mxu0 0
  %674 = vmatpush1.bf16.msra.mxu0 %v658
  %675 = vmatprep.subr.bf16.mxu0 0
  %676 = vmatpush1.bf16.msra.mxu0 0
  %677 = vmatprep.subr.bf16.mxu0 0
  %678 = vmatpush1.bf16.msra.mxu0 0
  %679 = vmatprep.subr.bf16.mxu0 0
  %680 = vmatpush1.bf16.msra.mxu0 0
  %681 = vmatprep.subr.bf16.mxu0 0
  %682 = vmatpush1.bf16.msra.mxu0 0
  %683 = vmatprep.subr.bf16.mxu0 0
  %684 = vmatpush1.bf16.msra.mxu0 0
  %685 = vmatprep.subr.bf16.mxu0 0
  %686 = vmatpush1.bf16.msra.mxu0 0
  %687 = vmatprep.subr.bf16.mxu0 0
  %688 = vmatpush1.bf16.msra.mxu0 0
  %689 = vmatprep.subr.bf16.mxu0 0
  %690 = vmatpush1.bf16.msra.mxu0 0
  %691 = vmatprep.subr.bf16.mxu0 0
  %692 = vmatpush1.bf16.msra.mxu0 0
  %693 = vmatprep.subr.bf16.mxu0 0
  %694 = vmatpush1.bf16.msra.mxu0 0
  %695 = vmatprep.subr.bf16.mxu0 0
  %696 = vmatpush1.bf16.msra.mxu0 0
  %697 = vmatprep.subr.bf16.mxu0 0
  %698 = vmatpush1.bf16.msra.mxu0 0
  %699 = vmatprep.mubr.bf16.mxu0 0
  %700 = vmatmul.mubr.bf16.gmra.mrb[0].mxu0 %v665
  %v701 = vpop.f32.mrb[0].mxu0
  %v702 = vadd.f32 0.0, %v701
  %v703 = vpop.f32.mrb[0].mxu0
  %v704 = vpop.f32.mrb[0].mxu0
  %v705 = vadd.f32 0.0, %v704
  %v706 = vpop.f32.mrb[0].mxu0
  %707 = vdwg.mxu0
  %v708 = vpack.c.bf16 %v705, %v702
  %v709 = vld [vmem:[%s3 + $0x20] sm:$0xf]
  %v710 = vld [vmem:[%s3 + $0x24] sm:$0xf]
  %v711 = vld [vmem:[%s3 + $0x28] sm:$0xf]
  %v712 = vld [vmem:[%s3 + $0x2c] sm:$0xf]
  %714 = vrot.lane.b32.xlu0 %v708, 96
  %v715 = vpop.permute.xlu0 %714
  %v720 = vunpack.c.l.b16 %v709
  %v721 = vunpack.c.l.b16 %v710
  %v722 = vunpack.c.l.b16 %v711
  %v723 = vunpack.c.l.b16 %v712
  %v724 = vpack.c.b16 %v721, %v720
  %v725 = vpack.c.b16 %v723, %v722
  %v729 = vsel %vm29, %v715, 0
  %731 = vmatprep.subr.bf16.mxu0 0
  %732 = vmatpush1.bf16.msra.mxu0 %v724
  %733 = vmatprep.subr.bf16.mxu0 0
  %734 = vmatpush1.bf16.msra.mxu0 %v725
  %735 = vmatprep.subr.bf16.mxu0 0
  %736 = vmatpush1.bf16.msra.mxu0 0
  %737 = vmatprep.subr.bf16.mxu0 0
  %738 = vmatpush1.bf16.msra.mxu0 0
  %739 = vmatprep.subr.bf16.mxu0 0
  %740 = vmatpush1.bf16.msra.mxu0 0
  %741 = vmatprep.subr.bf16.mxu0 0
  %742 = vmatpush1.bf16.msra.mxu0 0
  %743 = vmatprep.subr.bf16.mxu0 0
  %744 = vmatpush1.bf16.msra.mxu0 0
  %745 = vmatprep.subr.bf16.mxu0 0
  %746 = vmatpush1.bf16.msra.mxu0 0
  %747 = vmatprep.subr.bf16.mxu0 0
  %748 = vmatpush1.bf16.msra.mxu0 0
  %749 = vmatprep.subr.bf16.mxu0 0
  %750 = vmatpush1.bf16.msra.mxu0 0
  %751 = vmatprep.subr.bf16.mxu0 0
  %752 = vmatpush1.bf16.msra.mxu0 0
  %753 = vmatprep.subr.bf16.mxu0 0
  %754 = vmatpush1.bf16.msra.mxu0 0
  %755 = vmatprep.subr.bf16.mxu0 0
  %756 = vmatpush1.bf16.msra.mxu0 0
  %757 = vmatprep.subr.bf16.mxu0 0
  %758 = vmatpush1.bf16.msra.mxu0 0
  %759 = vmatprep.subr.bf16.mxu0 0
  %760 = vmatpush1.bf16.msra.mxu0 0
  %761 = vmatprep.subr.bf16.mxu0 0
  %762 = vmatpush1.bf16.msra.mxu0 0
  %763 = vmatprep.mubr.bf16.mxu0 0
  %764 = vmatmul.mubr.bf16.gmra.mrb[0].mxu0 %v729
  %v765 = vpop.f32.mrb[0].mxu0
  %v766 = vadd.f32 0.0, %v765
  %v767 = vpop.f32.mrb[0].mxu0
  %v768 = vpop.f32.mrb[0].mxu0
  %v769 = vadd.f32 0.0, %v768
  %v770 = vpop.f32.mrb[0].mxu0
  %771 = vdwg.mxu0
  %v772 = vadd.f32 %v21, %v766
  %v773 = vadd.f32 %v22, %v769
  %v774 = vsel %vm29, %v772, 0.0
  %775 = vadd.xlane.f32.xlu0 %v774
  %v776 = vpop.xlane.xlu0 %775
  %v777 = vsel %vm29, %v773, 0.0
  %778 = vadd.xlane.f32.xlu0 %v777
  %v779 = vpop.xlane.xlu0 %778
  %v780 = vmul.f32 %v776, %v36
  %v781 = vmul.f32 %v779, %v36
  %v782 = vsub.f32 %v772, %v780
  %v783 = vsub.f32 %v773, %v781
  %v784 = vmul.f32 %v782, %v782
  %v785 = vmul.f32 %v783, %v783
  %v786 = vsel %vm29, %v784, 0.0
  %787 = vadd.xlane.f32.xlu0 %v786
  %v788 = vpop.xlane.xlu0 %787
  %v789 = vsel %vm29, %v785, 0.0
  %790 = vadd.xlane.f32.xlu0 %v789
  %v791 = vpop.xlane.xlu0 %790
  %v792 = vmul.f32 %v788, %v36
  %v793 = vmul.f32 %v791, %v36
  %v794 = vadd.f32 %v792, 1e-05
  %v795 = vadd.f32 %v793, 1e-05
  %v796 = vrsqrt.pop %v794
  %v797 = vrsqrt.pop %v795
  %v798 = vmul.f32 %v782, %v796
  %v799 = vmul.f32 %v783, %v797
  %v800 = vlaneseq
  %v801 = vshrl.u32 %v800, 7
  %v802 = vsub.s32 0, %v801
  %v803 = vrot.slane %v25, %v802
  %v804 = vmul.f32 %v798, %v803
  %v805 = vmul.f32 %v799, %v803
  %v806 = vlaneseq
  %v807 = vshrl.u32 %v806, 7
  %v808 = vsub.s32 0, %v807
  %v809 = vrot.slane %v26, %v808
  %v810 = vadd.f32 %v804, %v809
  %v811 = vadd.f32 %v805, %v809
  %v812 = vpack.c.bf16 %v811, %v810
  %v813 = vld [vmem:[%s3 + $0x10] sm:$0xf]
  %v814 = vld [vmem:[%s3 + $0x14] sm:$0xf]
  %v815 = vld [vmem:[%s3 + $0x18] sm:$0xf]
  %v816 = vld [vmem:[%s3 + $0x1c] sm:$0xf]
  %v817 = vlaneseq
  %v818 = vshrl.u32 %v817, 7
  %v819 = vsub.s32 0, %v818
  %v820 = vrot.slane %v27, %v819
  %v825 = vunpack.c.l.b16 %v813
  %v826 = vunpack.c.l.b16 %v814
  %v827 = vunpack.c.l.b16 %v815
  %v828 = vunpack.c.l.b16 %v816
  %v829 = vpack.c.b16 %v826, %v825
  %v830 = vpack.c.b16 %v828, %v827
  %v834 = vsel %vm29, %v812, 0
  %836 = vmatprep.subr.bf16.mxu0 0
  %837 = vmatpush1.bf16.msra.mxu0 %v829
  %838 = vmatprep.subr.bf16.mxu0 0
  %839 = vmatpush1.bf16.msra.mxu0 %v830
  %840 = vmatprep.subr.bf16.mxu0 0
  %841 = vmatpush1.bf16.msra.mxu0 0
  %842 = vmatprep.subr.bf16.mxu0 0
  %843 = vmatpush1.bf16.msra.mxu0 0
  %844 = vmatprep.subr.bf16.mxu0 0
  %845 = vmatpush1.bf16.msra.mxu0 0
  %846 = vmatprep.subr.bf16.mxu0 0
  %847 = vmatpush1.bf16.msra.mxu0 0
  %848 = vmatprep.subr.bf16.mxu0 0
  %849 = vmatpush1.bf16.msra.mxu0 0
  %850 = vmatprep.subr.bf16.mxu0 0
  %851 = vmatpush1.bf16.msra.mxu0 0
  %852 = vmatprep.subr.bf16.mxu0 0
  %853 = vmatpush1.bf16.msra.mxu0 0
  %854 = vmatprep.subr.bf16.mxu0 0
  %855 = vmatpush1.bf16.msra.mxu0 0
  %856 = vmatprep.subr.bf16.mxu0 0
  %857 = vmatpush1.bf16.msra.mxu0 0
  %858 = vmatprep.subr.bf16.mxu0 0
  %859 = vmatpush1.bf16.msra.mxu0 0
  %860 = vmatprep.subr.bf16.mxu0 0
  %861 = vmatpush1.bf16.msra.mxu0 0
  %862 = vmatprep.subr.bf16.mxu0 0
  %863 = vmatpush1.bf16.msra.mxu0 0
  %864 = vmatprep.subr.bf16.mxu0 0
  %865 = vmatpush1.bf16.msra.mxu0 0
  %866 = vmatprep.subr.bf16.mxu0 0
  %867 = vmatpush1.bf16.msra.mxu0 0
  %868 = vmatprep.mubr.bf16.mxu0 0
  %869 = vmatmul.mubr.bf16.gmra.mrb[0].mxu0 %v834
  %v870 = vpop.f32.mrb[0].mxu0
  %v871 = vadd.f32 %v820, %v870
  %v872 = vpop.f32.mrb[0].mxu0
  %v873 = vpop.f32.mrb[0].mxu0
  %v874 = vadd.f32 %v820, %v873
  %v875 = vpop.f32.mrb[0].mxu0
  %876 = vdwg.mxu0
  %v877 = vmul.f32 %v871, 0.5
  %v878 = vmul.f32 %v874, 0.5
  %v879 = vmul.f32 %v871, 0.044715
  %v880 = vmul.f32 %v874, 0.044715
  %v881 = vmul.f32 %v879, %v871
  %v882 = vmul.f32 %v880, %v874
  %v883 = vmul.f32 %v881, %v871
  %v884 = vmul.f32 %v882, %v874
  %v885 = vadd.f32 %v871, %v883
  %v886 = vadd.f32 %v874, %v884
  %v887 = vmul.f32 %v885, 0.7978846
  %v888 = vmul.f32 %v886, 0.7978846
  %v889 = vtanh.pop %v887
  %v890 = vtanh.pop %v888
  %v891 = vadd.f32 %v889, 1.0
  %v892 = vadd.f32 %v890, 1.0
  %v893 = vmul.f32 %v877, %v891
  %v894 = vmul.f32 %v878, %v892
  %897 = vrot.lane.b32.xlu0 %v893, 64
  %v898 = vpop.permute.xlu0 %897
  %899 = vrot.lane.b32.xlu0 %v894, 64
  %v900 = vpop.permute.xlu0 %899
  %v903 = vmul.f32 %v871, %v898
  %v904 = vmul.f32 %v874, %v900
  %v905 = vpack.c.bf16 %v904, %v903
  %v906 = vld [vmem:[%s3 + $0x30] sm:$0xf]
  %v907 = vld [vmem:[%s3 + $0x34] sm:$0xf]
  %v908 = vld [vmem:[%s3 + $0x38] sm:$0xf]
  %v909 = vld [vmem:[%s3 + $0x3c] sm:$0xf]
  %v910 = vld [vmem:[%s3 + $0x40] sm:$0xf]
  %v911 = vld [vmem:[%s3 + $0x44] sm:$0xf]
  %v912 = vld [vmem:[%s3 + $0x48] sm:$0xf]
  %v913 = vld [vmem:[%s3 + $0x4c] sm:$0xf]
  %v922 = vunpack.c.l.b16 %v906
  %v923 = vunpack.c.l.b16 %v907
  %v924 = vunpack.c.l.b16 %v908
  %v925 = vunpack.c.l.b16 %v909
  %v926 = vunpack.c.l.b16 %v910
  %v927 = vunpack.c.l.b16 %v911
  %v928 = vunpack.c.l.b16 %v912
  %v929 = vunpack.c.l.b16 %v913
  %v930 = vpack.c.b16 %v923, %v922
  %v931 = vpack.c.b16 %v925, %v924
  %v932 = vpack.c.b16 %v927, %v926
  %v933 = vpack.c.b16 %v929, %v928
  %v939 = vsel %vm331, %v905, 0
  %941 = vmatprep.subr.bf16.mxu0 0
  %942 = vmatpush1.bf16.msra.mxu0 %v930
  %943 = vmatprep.subr.bf16.mxu0 0
  %944 = vmatpush1.bf16.msra.mxu0 %v931
  %945 = vmatprep.subr.bf16.mxu0 0
  %946 = vmatpush1.bf16.msra.mxu0 %v932
  %947 = vmatprep.subr.bf16.mxu0 0
  %948 = vmatpush1.bf16.msra.mxu0 %v933
  %949 = vmatprep.subr.bf16.mxu0 0
  %950 = vmatpush1.bf16.msra.mxu0 0
  %951 = vmatprep.subr.bf16.mxu0 0
  %952 = vmatpush1.bf16.msra.mxu0 0
  %953 = vmatprep.subr.bf16.mxu0 0
  %954 = vmatpush1.bf16.msra.mxu0 0
  %955 = vmatprep.subr.bf16.mxu0 0
  %956 = vmatpush1.bf16.msra.mxu0 0
  %957 = vmatprep.subr.bf16.mxu0 0
  %958 = vmatpush1.bf16.msra.mxu0 0
  %959 = vmatprep.subr.bf16.mxu0 0
  %960 = vmatpush1.bf16.msra.mxu0 0
  %961 = vmatprep.subr.bf16.mxu0 0
  %962 = vmatpush1.bf16.msra.mxu0 0
  %963 = vmatprep.subr.bf16.mxu0 0
  %964 = vmatpush1.bf16.msra.mxu0 0
  %965 = vmatprep.subr.bf16.mxu0 0
  %966 = vmatpush1.bf16.msra.mxu0 0
  %967 = vmatprep.subr.bf16.mxu0 0
  %968 = vmatpush1.bf16.msra.mxu0 0
  %969 = vmatprep.subr.bf16.mxu0 0
  %970 = vmatpush1.bf16.msra.mxu0 0
  %971 = vmatprep.subr.bf16.mxu0 0
  %972 = vmatpush1.bf16.msra.mxu0 0
  %973 = vmatprep.mubr.bf16.mxu0 0
  %974 = vmatmul.mubr.bf16.gmra.mrb[0].mxu0 %v939
  %v975 = vpop.f32.mrb[0].mxu0
  %v976 = vadd.f32 0.0, %v975
  %v977 = vpop.f32.mrb[0].mxu0
  %v978 = vpop.f32.mrb[0].mxu0
  %v979 = vadd.f32 0.0, %v978
  %v980 = vpop.f32.mrb[0].mxu0
  %981 = vdwg.mxu0
  %v982 = vadd.f32 %v772, %v976
  %v983 = vadd.f32 %v773, %v979
  %v984 = vlaneseq
  %v985 = vshrl.u32 %v984, 7
  %v986 = vsub.s32 0, %v985
  %v987 = vrot.slane %v28, %v986
  %v988 = vadd.f32 %v982, %v987
  %v989 = vadd.f32 %v983, %v987
  %v990 = vld [vmem:[%s4 + $0x6] sm:$0x1]
  %v991 = vld [vmem:[%s4 + $0x7] sm:$0x1]
  %v992 = vld [vmem:[%s4 + $0x8] sm:$0x1]
  %v993 = vld [vmem:[%s4 + $0x9] sm:$0x1]
  %v994 = vld [vmem:[%s4 + $0xa] sm:$0x1]
  %v995 = vld [vmem:[%s4 + $0xb] sm:$0x1]
  %v996 = vsel %vm29, %v988, 0.0
  %997 = vadd.xlane.f32.xlu0 %v996
  %v998 = vpop.xlane.xlu0 %997
  %v999 = vsel %vm29, %v989, 0.0
  %1000 = vadd.xlane.f32.xlu0 %v999
  %v1001 = vpop.xlane.xlu0 %1000
  %v1002 = vmul.f32 %v998, %v36
  %v1003 = vmul.f32 %v1001, %v36
  %v1004 = vsub.f32 %v988, %v1002
  %v1005 = vsub.f32 %v989, %v1003
  %v1006 = vmul.f32 %v1004, %v1004
  %v1007 = vmul.f32 %v1005, %v1005
  %v1008 = vsel %vm29, %v1006, 0.0
  %1009 = vadd.xlane.f32.xlu0 %v1008
  %v1010 = vpop.xlane.xlu0 %1009
  %v1011 = vsel %vm29, %v1007, 0.0
  %1012 = vadd.xlane.f32.xlu0 %v1011
  %v1013 = vpop.xlane.xlu0 %1012
  %v1014 = vmul.f32 %v1010, %v36
  %v1015 = vmul.f32 %v1013, %v36
  %v1016 = vadd.f32 %v1014, 1e-05
  %v1017 = vadd.f32 %v1015, 1e-05
  %v1018 = vrsqrt.pop %v1016
  %v1019 = vrsqrt.pop %v1017
  %v1020 = vmul.f32 %v1004, %v1018
  %v1021 = vmul.f32 %v1005, %v1019
  %v1022 = vlaneseq
  %v1023 = vshrl.u32 %v1022, 7
  %v1024 = vsub.s32 0, %v1023
  %v1025 = vrot.slane %v990, %v1024
  %v1026 = vmul.f32 %v1020, %v1025
  %v1027 = vmul.f32 %v1021, %v1025
  %v1028 = vlaneseq
  %v1029 = vshrl.u32 %v1028, 7
  %v1030 = vsub.s32 0, %v1029
  %v1031 = vrot.slane %v991, %v1030
  %v1032 = vadd.f32 %v1026, %v1031
  %v1033 = vadd.f32 %v1027, %v1031
  %v1034 = vpack.c.bf16 %v1033, %v1032
  %v1035 = vld [vmem:[%s3 + $0x50] sm:$0xf]
  %v1036 = vld [vmem:[%s3 + $0x54] sm:$0xf]
  %v1037 = vld [vmem:[%s3 + $0x58] sm:$0xf]
  %v1038 = vld [vmem:[%s3 + $0x5c] sm:$0xf]
  %v1043 = vunpack.c.l.b16 %v1035
  %v1044 = vunpack.c.l.b16 %v1036
  %v1045 = vunpack.c.l.b16 %v1037
  %v1046 = vunpack.c.l.b16 %v1038
  %v1047 = vpack.c.b16 %v1044, %v1043
  %v1048 = vpack.c.b16 %v1046, %v1045
  %v1052 = vsel %vm29, %v1034, 0
  %1054 = vmatprep.subr.bf16.mxu0 0
  %1055 = vmatpush1.bf16.msra.mxu0 %v1047
  %1056 = vmatprep.subr.bf16.mxu0 0
  %1057 = vmatpush1.bf16.msra.mxu0 %v1048
  %1058 = vmatprep.subr.bf16.mxu0 0
  %1059 = vmatpush1.bf16.msra.mxu0 0
  %1060 = vmatprep.subr.bf16.mxu0 0
  %1061 = vmatpush1.bf16.msra.mxu0 0
  %1062 = vmatprep.subr.bf16.mxu0 0
  %1063 = vmatpush1.bf16.msra.mxu0 0
  %1064 = vmatprep.subr.bf16.mxu0 0
  %1065 = vmatpush1.bf16.msra.mxu0 0
  %1066 = vmatprep.subr.bf16.mxu0 0
  %1067 = vmatpush1.bf16.msra.mxu0 0
  %1068 = vmatprep.subr.bf16.mxu0 0
  %1069 = vmatpush1.bf16.msra.mxu0 0
  %1070 = vmatprep.subr.bf16.mxu0 0
  %1071 = vmatpush1.bf16.msra.mxu0 0
  %1072 = vmatprep.subr.bf16.mxu0 0
  %1073 = vmatpush1.bf16.msra.mxu0 0
  %1074 = vmatprep.subr.bf16.mxu0 0
  %1075 = vmatpush1.bf16.msra.mxu0 0
  %1076 = vmatprep.subr.bf16.mxu0 0
  %1077 = vmatpush1.bf16.msra.mxu0 0
  %1078 = vmatprep.subr.bf16.mxu0 0
  %1079 = vmatpush1.bf16.msra.mxu0 0
  %1080 = vmatprep.subr.bf16.mxu0 0
  %1081 = vmatpush1.bf16.msra.mxu0 0
  %1082 = vmatprep.subr.bf16.mxu0 0
  %1083 = vmatpush1.bf16.msra.mxu0 0
  %1084 = vmatprep.subr.bf16.mxu0 0
  %1085 = vmatpush1.bf16.msra.mxu0 0
  %1086 = vmatprep.mubr.bf16.mxu0 0
  %1087 = vmatmul.mubr.bf16.gmra.mrb[0].mxu0 %v1052
  %v1088 = vpop.f32.mrb[0].mxu0
  %v1089 = vadd.f32 0.0, %v1088
  %v1090 = vpop.f32.mrb[0].mxu0
  %v1091 = vpop.f32.mrb[0].mxu0
  %v1092 = vadd.f32 0.0, %v1091
  %v1093 = vpop.f32.mrb[0].mxu0
  %1094 = vdwg.mxu0
  %v1095 = vpack.c.bf16 %v1092, %v1089
  %1096 = vmatprep.subr.bf16.mxu0 0
  %1097 = vmatpush1.bf16.msra.mxu0 %v1095
  %1098 = vmatprep.subr.bf16.mxu0 0
  %1099 = vmatpush1.bf16.msra.mxu0 0
  %1100 = vmatprep.subr.bf16.mxu0 0
  %1101 = vmatpush1.bf16.msra.mxu0 0
  %1102 = vmatprep.subr.bf16.mxu0 0
  %1103 = vmatpush1.bf16.msra.mxu0 0
  %1104 = vmatprep.subr.bf16.mxu0 0
  %1105 = vmatpush1.bf16.msra.mxu0 0
  %1106 = vmatprep.subr.bf16.mxu0 0
  %1107 = vmatpush1.bf16.msra.mxu0 0
  %1108 = vmatprep.subr.bf16.mxu0 0
  %1109 = vmatpush1.bf16.msra.mxu0 0
  %1110 = vmatprep.subr.bf16.mxu0 0
  %1111 = vmatpush1.bf16.msra.mxu0 0
  %1112 = vmatprep.subr.bf16.mxu0 0
  %1113 = vmatpush1.bf16.msra.mxu0 0
  %1114 = vmatprep.subr.bf16.mxu0 0
  %1115 = vmatpush1.bf16.msra.mxu0 0
  %1116 = vmatprep.subr.bf16.mxu0 0
  %1117 = vmatpush1.bf16.msra.mxu0 0
  %1118 = vmatprep.subr.bf16.mxu0 0
  %1119 = vmatpush1.bf16.msra.mxu0 0
  %1120 = vmatprep.subr.bf16.mxu0 0
  %1121 = vmatpush1.bf16.msra.mxu0 0
  %1122 = vmatprep.subr.bf16.mxu0 0
  %1123 = vmatpush1.bf16.msra.mxu0 0
  %1124 = vmatprep.subr.bf16.mxu0 0
  %1125 = vmatpush1.bf16.msra.mxu0 0
  %1126 = vmatprep.subr.bf16.mxu0 0
  %1127 = vmatpush1.bf16.msra.mxu0 0
  %1128 = vmatprep.mubr.bf16.mxu0 0
  %1129 = vmatmul.mubr.bf16.gmra.mrb[0].mxu0 %v175
  %v1130 = vpop.f32.mrb[0].mxu0
  %v1131 = vadd.f32 0.0, %v1130
  %v1132 = vpop.f32.mrb[0].mxu0
  %v1133 = vpop.f32.mrb[0].mxu0
  %v1134 = vadd.f32 0.0, %v1133
  %v1135 = vpop.f32.mrb[0].mxu0
  %1136 = vmatprep.mubr.bf16.mxu0 0
  %1137 = vmatmul.mubr.bf16.gmra.mrb[0].mxu0 %v178
  %v1138 = vpop.f32.mrb[0].mxu0
  %v1139 = vadd.f32 0.0, %v1138
  %v1140 = vpop.f32.mrb[0].mxu0
  %v1141 = vpop.f32.mrb[0].mxu0
  %v1142 = vadd.f32 0.0, %v1141
  %v1143 = vpop.f32.mrb[0].mxu0
  %1144 = vmatprep.mubr.bf16.mxu0 0
  %1145 = vmatmul.mubr.bf16.gmra.mrb[0].mxu0 %v181
  %v1146 = vpop.f32.mrb[0].mxu0
  %v1147 = vadd.f32 0.0, %v1146
  %v1148 = vpop.f32.mrb[0].mxu0
  %v1149 = vpop.f32.mrb[0].mxu0
  %v1150 = vadd.f32 0.0, %v1149
  %v1151 = vpop.f32.mrb[0].mxu0
  %1152 = vmatprep.mubr.bf16.mxu0 0
  %1153 = vmatmul.mubr.bf16.gmra.mrb[0].mxu0 %v184
  %v1154 = vpop.f32.mrb[0].mxu0
  %v1155 = vadd.f32 0.0, %v1154
  %v1156 = vpop.f32.mrb[0].mxu0
  %v1157 = vpop.f32.mrb[0].mxu0
  %v1158 = vadd.f32 0.0, %v1157
  %v1159 = vpop.f32.mrb[0].mxu0
  %1160 = vmatprep.mubr.bf16.mxu0 0
  %1161 = vmatmul.mubr.bf16.gmra.mrb[0].mxu0 %v187
  %v1162 = vpop.f32.mrb[0].mxu0
  %v1163 = vadd.f32 0.0, %v1162
  %v1164 = vpop.f32.mrb[0].mxu0
  %v1165 = vpop.f32.mrb[0].mxu0
  %v1166 = vadd.f32 0.0, %v1165
  %v1167 = vpop.f32.mrb[0].mxu0
  %1168 = vmatprep.mubr.bf16.mxu0 0
  %1169 = vmatmul.mubr.bf16.gmra.mrb[0].mxu0 %v190
  %v1170 = vpop.f32.mrb[0].mxu0
  %v1171 = vadd.f32 0.0, %v1170
  %v1172 = vpop.f32.mrb[0].mxu0
  %v1173 = vpop.f32.mrb[0].mxu0
  %v1174 = vadd.f32 0.0, %v1173
  %v1175 = vpop.f32.mrb[0].mxu0
  %1176 = vdwg.mxu0
  %v1177 = vmul.f32 %v1131, %v273
  %v1178 = vmul.f32 %v1134, %v274
  %v1179 = vmul.f32 %v1139, %v275
  %v1180 = vmul.f32 %v1142, %v276
  %v1181 = vmul.f32 %v1147, %v277
  %v1182 = vmul.f32 %v1150, %v278
  %v1183 = vmul.f32 %v1155, %v279
  %v1184 = vmul.f32 %v1158, %v280
  %v1185 = vmul.f32 %v1163, %v289
  %v1186 = vmul.f32 %v1166, %v290
  %v1187 = vmul.f32 %v1171, %v291
  %v1188 = vmul.f32 %v1174, %v292
  %v1189 = vpack.c.bf16 %v1186, %v1185
  %v1190 = vpack.c.bf16 %v1188, %v1187
  %v1192 = vsel %vm331, %v1189, 0
  %v1195 = vsel %vm331, %v1190, 0
  %1197 = vmatprep.subr.bf16.mxu0 0
  %1198 = vmatpush1.bf16.msra.mxu0 %v323
  %1199 = vmatprep.subr.bf16.mxu0 0
  %1200 = vmatpush1.bf16.msra.mxu0 %v324
  %1201 = vmatprep.subr.bf16.mxu0 0
  %1202 = vmatpush1.bf16.msra.mxu0 %v325
  %1203 = vmatprep.subr.bf16.mxu0 0
  %1204 = vmatpush1.bf16.msra.mxu0 %v326
  %1205 = vmatprep.subr.bf16.mxu0 0
  %1206 = vmatpush1.bf16.msra.mxu0 0
  %1207 = vmatprep.subr.bf16.mxu0 0
  %1208 = vmatpush1.bf16.msra.mxu0 0
  %1209 = vmatprep.subr.bf16.mxu0 0
  %1210 = vmatpush1.bf16.msra.mxu0 0
  %1211 = vmatprep.subr.bf16.mxu0 0
  %1212 = vmatpush1.bf16.msra.mxu0 0
  %1213 = vmatprep.subr.bf16.mxu0 0
  %1214 = vmatpush1.bf16.msra.mxu0 0
  %1215 = vmatprep.subr.bf16.mxu0 0
  %1216 = vmatpush1.bf16.msra.mxu0 0
  %1217 = vmatprep.subr.bf16.mxu0 0
  %1218 = vmatpush1.bf16.msra.mxu0 0
  %1219 = vmatprep.subr.bf16.mxu0 0
  %1220 = vmatpush1.bf16.msra.mxu0 0
  %1221 = vmatprep.subr.bf16.mxu0 0
  %1222 = vmatpush1.bf16.msra.mxu0 0
  %1223 = vmatprep.subr.bf16.mxu0 0
  %1224 = vmatpush1.bf16.msra.mxu0 0
  %1225 = vmatprep.subr.bf16.mxu0 0
  %1226 = vmatpush1.bf16.msra.mxu0 0
  %1227 = vmatprep.subr.bf16.mxu0 0
  %1228 = vmatpush1.bf16.msra.mxu0 0
  %1229 = vmatprep.mubr.bf16.mxu0 0
  %1230 = vmatmul.mubr.bf16.gmra.mrb[0].mxu0 %v1192
  %v1231 = vpop.f32.mrb[0].mxu0
  %v1232 = vadd.f32 0.0, %v1231
  %v1233 = vpop.f32.mrb[0].mxu0
  %v1234 = vpop.f32.mrb[0].mxu0
  %v1235 = vadd.f32 0.0, %v1234
  %v1236 = vpop.f32.mrb[0].mxu0
  %1237 = vmatprep.mubr.bf16.mxu0 0
  %1238 = vmatmul.mubr.bf16.gmra.mrb[0].mxu0 %v1195
  %v1239 = vpop.f32.mrb[0].mxu0
  %v1240 = vadd.f32 0.0, %v1239
  %v1241 = vpop.f32.mrb[0].mxu0
  %v1242 = vpop.f32.mrb[0].mxu0
  %v1243 = vadd.f32 0.0, %v1242
  %v1244 = vpop.f32.mrb[0].mxu0
  %1245 = vdwg.mxu0
  %v1246 = vpack.c.bf16 %v1178, %v1177
  %v1247 = vpack.c.bf16 %v1180, %v1179
  %v1248 = vpack.c.bf16 %v1182, %v1181
  %v1249 = vpack.c.bf16 %v1184, %v1183
  %v1250 = vpack.c.bf16 %v1235, %v1232
  %v1251 = vpack.c.bf16 %v1243, %v1240
  %v1253 = vsel %vm331, %v1246, 0
  %v1256 = vsel %vm331, %v1247, 0
  %v1259 = vsel %vm331, %v1248, 0
  %v1262 = vsel %vm331, %v1249, 0
  %v1265 = vsel %vm331, %v1250, 0
  %v1268 = vsel %vm331, %v1251, 0
  %1270 = vmatprep.subr.bf16.mxu0 0
  %1271 = vmatpush1.bf16.xpose.msra.mxu0 %v1265
  %1272 = vmatprep.subr.bf16.mxu0 0
  %1273 = vmatpush1.bf16.xpose.msra.mxu0 %v1268
  %1274 = vmatprep.subr.bf16.mxu0 0
  %1275 = vmatpush1.bf16.xpose.msra.mxu0 0
  %1276 = vmatprep.subr.bf16.mxu0 0
  %1277 = vmatpush1.bf16.xpose.msra.mxu0 0
  %1278 = vmatprep.subr.bf16.mxu0 0
  %1279 = vmatpush1.bf16.xpose.msra.mxu0 0
  %1280 = vmatprep.subr.bf16.mxu0 0
  %1281 = vmatpush1.bf16.xpose.msra.mxu0 0
  %1282 = vmatprep.subr.bf16.mxu0 0
  %1283 = vmatpush1.bf16.xpose.msra.mxu0 0
  %1284 = vmatprep.subr.bf16.mxu0 0
  %1285 = vmatpush1.bf16.xpose.msra.mxu0 0
  %1286 = vmatprep.subr.bf16.mxu0 0
  %1287 = vmatpush1.bf16.xpose.msra.mxu0 0
  %1288 = vmatprep.subr.bf16.mxu0 0
  %1289 = vmatpush1.bf16.xpose.msra.mxu0 0
  %1290 = vmatprep.subr.bf16.mxu0 0
  %1291 = vmatpush1.bf16.xpose.msra.mxu0 0
  %1292 = vmatprep.subr.bf16.mxu0 0
  %1293 = vmatpush1.bf16.xpose.msra.mxu0 0
  %1294 = vmatprep.subr.bf16.mxu0 0
  %1295 = vmatpush1.bf16.xpose.msra.mxu0 0
  %1296 = vmatprep.subr.bf16.mxu0 0
  %1297 = vmatpush1.bf16.xpose.msra.mxu0 0
  %1298 = vmatprep.subr.bf16.mxu0 0
  %1299 = vmatpush1.bf16.xpose.msra.mxu0 0
  %1300 = vmatprep.subr.bf16.mxu0 0
  %1301 = vmatpush1.bf16.xpose.msra.mxu0 0
  %1302 = vmatprep.mubr.bf16.mxu0 0
  %1303 = vmatmul.mubr.bf16.gmra.mrb[0].mxu0 %v1253
  %v1304 = vpop.f32.mrb[0].mxu0
  %v1305 = vadd.f32 0.0, %v1304
  %v1306 = vpop.f32.mrb[0].mxu0
  %v1307 = vpop.f32.mrb[0].mxu0
  %v1308 = vadd.f32 0.0, %v1307
  %v1309 = vpop.f32.mrb[0].mxu0
  %1310 = vmatprep.mubr.bf16.mxu0 0
  %1311 = vmatmul.mubr.bf16.gmra.mrb[0].mxu0 %v1256
  %v1312 = vpop.f32.mrb[0].mxu0
  %v1313 = vadd.f32 0.0, %v1312
  %v1314 = vpop.f32.mrb[0].mxu0
  %v1315 = vpop.f32.mrb[0].mxu0
  %v1316 = vadd.f32 0.0, %v1315
  %v1317 = vpop.f32.mrb[0].mxu0
  %1318 = vmatprep.mubr.bf16.mxu0 0
  %1319 = vmatmul.mubr.bf16.gmra.mrb[0].mxu0 %v1259
  %v1320 = vpop.f32.mrb[0].mxu0
  %v1321 = vadd.f32 0.0, %v1320
  %v1322 = vpop.f32.mrb[0].mxu0
  %v1323 = vpop.f32.mrb[0].mxu0
  %v1324 = vadd.f32 0.0, %v1323
  %v1325 = vpop.f32.mrb[0].mxu0
  %1326 = vmatprep.mubr.bf16.mxu0 0
  %1327 = vmatmul.mubr.bf16.gmra.mrb[0].mxu0 %v1262
  %v1328 = vpop.f32.mrb[0].mxu0
  %v1329 = vadd.f32 0.0, %v1328
  %v1330 = vpop.f32.mrb[0].mxu0
  %v1331 = vpop.f32.mrb[0].mxu0
  %v1332 = vadd.f32 0.0, %v1331
  %v1333 = vpop.f32.mrb[0].mxu0
  %1334 = vdwg.mxu0
  %v1335 = vmul.f32 %v1305, 0.35355338
  %v1336 = vmul.f32 %v1308, 0.35355338
  %v1337 = vmul.f32 %v1313, 0.35355338
  %v1338 = vmul.f32 %v1316, 0.35355338
  %v1339 = vmul.f32 %v1321, 0.35355338
  %v1340 = vmul.f32 %v1324, 0.35355338
  %v1341 = vmul.f32 %v1329, 0.35355338
  %v1342 = vmul.f32 %v1332, 0.35355338
  %v1343 = vadd.f32 %v1335, %v484
  %v1344 = vadd.f32 %v1336, %v485
  %v1345 = vadd.f32 %v1337, %v486
  %v1346 = vadd.f32 %v1338, %v487
  %v1347 = vadd.f32 %v1339, %v488
  %v1348 = vadd.f32 %v1340, %v489
  %v1349 = vadd.f32 %v1341, %v490
  %v1350 = vadd.f32 %v1342, %v491
  %v1351 = vmul.f32 %v1343, 1.442695
  %v1352 = vpow.pop %v1351
  %v1353 = vmul.f32 %v1344, 1.442695
  %v1354 = vpow.pop %v1353
  %v1355 = vmul.f32 %v1345, 1.442695
  %v1356 = vpow.pop %v1355
  %v1357 = vmul.f32 %v1346, 1.442695
  %v1358 = vpow.pop %v1357
  %v1359 = vmul.f32 %v1347, 1.442695
  %v1360 = vpow.pop %v1359
  %v1361 = vmul.f32 %v1348, 1.442695
  %v1362 = vpow.pop %v1361
  %v1363 = vmul.f32 %v1349, 1.442695
  %v1364 = vpow.pop %v1363
  %v1365 = vmul.f32 %v1350, 1.442695
  %v1366 = vpow.pop %v1365
  %v1367 = vsel %vm29, %v1352, 0.0
  %1368 = vadd.xlane.f32.xlu0 %v1367
  %v1369 = vpop.xlane.xlu0 %1368
  %v1370 = vsel %vm29, %v1354, 0.0
  %1371 = vadd.xlane.f32.xlu0 %v1370
  %v1372 = vpop.xlane.xlu0 %1371
  %v1373 = vsel %vm29, %v1356, 0.0
  %1374 = vadd.xlane.f32.xlu0 %v1373
  %v1375 = vpop.xlane.xlu0 %1374
  %v1376 = vsel %vm29, %v1358, 0.0
  %1377 = vadd.xlane.f32.xlu0 %v1376
  %v1378 = vpop.xlane.xlu0 %1377
  %v1379 = vsel %vm29, %v1360, 0.0
  %1380 = vadd.xlane.f32.xlu0 %v1379
  %v1381 = vpop.xlane.xlu0 %1380
  %v1382 = vsel %vm29, %v1362, 0.0
  %1383 = vadd.xlane.f32.xlu0 %v1382
  %v1384 = vpop.xlane.xlu0 %1383
  %v1385 = vsel %vm29, %v1364, 0.0
  %1386 = vadd.xlane.f32.xlu0 %v1385
  %v1387 = vpop.xlane.xlu0 %1386
  %v1388 = vsel %vm29, %v1366, 0.0
  %1389 = vadd.xlane.f32.xlu0 %v1388
  %v1390 = vpop.xlane.xlu0 %1389
  %v1391 = vrcp.pop %v1369
  %v1392 = vrcp.pop %v1372
  %v1393 = vrcp.pop %v1375
  %v1394 = vrcp.pop %v1378
  %v1395 = vrcp.pop %v1381
  %v1396 = vrcp.pop %v1384
  %v1397 = vrcp.pop %v1387
  %v1398 = vrcp.pop %v1390
  %v1399 = vmul.f32 %v1352, %v1391
  %v1400 = vmul.f32 %v1354, %v1392
  %v1401 = vmul.f32 %v1356, %v1393
  %v1402 = vmul.f32 %v1358, %v1394
  %v1403 = vmul.f32 %v1360, %v1395
  %v1404 = vmul.f32 %v1362, %v1396
  %v1405 = vmul.f32 %v1364, %v1397
  %v1406 = vmul.f32 %v1366, %v1398
  %v1407 = vpack.c.bf16 %v1400, %v1399
  %v1408 = vpack.c.bf16 %v1402, %v1401
  %v1409 = vpack.c.bf16 %v1404, %v1403
  %v1410 = vpack.c.bf16 %v1406, %v1405
  %v1412 = vsel %vm29, %v1407, 0
  %v1415 = vsel %vm29, %v1408, 0
  %v1418 = vsel %vm29, %v1409, 0
  %v1421 = vsel %vm29, %v1410, 0
  %1423 = vmatprep.subr.bf16.mxu0 0
  %1424 = vmatpush1.bf16.msra.mxu0 %v1250
  %1425 = vmatprep.subr.bf16.mxu0 0
  %1426 = vmatpush1.bf16.msra.mxu0 %v1251
  %1427 = vmatprep.subr.bf16.mxu0 0
  %1428 = vmatpush1.bf16.msra.mxu0 0
  %1429 = vmatprep.subr.bf16.mxu0 0
  %1430 = vmatpush1.bf16.msra.mxu0 0
  %1431 = vmatprep.subr.bf16.mxu0 0
  %1432 = vmatpush1.bf16.msra.mxu0 0
  %1433 = vmatprep.subr.bf16.mxu0 0
  %1434 = vmatpush1.bf16.msra.mxu0 0
  %1435 = vmatprep.subr.bf16.mxu0 0
  %1436 = vmatpush1.bf16.msra.mxu0 0
  %1437 = vmatprep.subr.bf16.mxu0 0
  %1438 = vmatpush1.bf16.msra.mxu0 0
  %1439 = vmatprep.subr.bf16.mxu0 0
  %1440 = vmatpush1.bf16.msra.mxu0 0
  %1441 = vmatprep.subr.bf16.mxu0 0
  %1442 = vmatpush1.bf16.msra.mxu0 0
  %1443 = vmatprep.subr.bf16.mxu0 0
  %1444 = vmatpush1.bf16.msra.mxu0 0
  %1445 = vmatprep.subr.bf16.mxu0 0
  %1446 = vmatpush1.bf16.msra.mxu0 0
  %1447 = vmatprep.subr.bf16.mxu0 0
  %1448 = vmatpush1.bf16.msra.mxu0 0
  %1449 = vmatprep.subr.bf16.mxu0 0
  %1450 = vmatpush1.bf16.msra.mxu0 0
  %1451 = vmatprep.subr.bf16.mxu0 0
  %1452 = vmatpush1.bf16.msra.mxu0 0
  %1453 = vmatprep.subr.bf16.mxu0 0
  %1454 = vmatpush1.bf16.msra.mxu0 0
  %1455 = vmatprep.mubr.bf16.mxu0 0
  %1456 = vmatmul.mubr.bf16.gmra.mrb[0].mxu0 %v1412
  %v1457 = vpop.f32.mrb[0].mxu0
  %v1458 = vadd.f32 0.0, %v1457
  %v1459 = vpop.f32.mrb[0].mxu0
  %v1460 = vpop.f32.mrb[0].mxu0
  %v1461 = vadd.f32 0.0, %v1460
  %v1462 = vpop.f32.mrb[0].mxu0
  %1463 = vmatprep.mubr.bf16.mxu0 0
  %1464 = vmatmul.mubr.bf16.gmra.mrb[0].mxu0 %v1415
  %v1465 = vpop.f32.mrb[0].mxu0
  %v1466 = vadd.f32 0.0, %v1465
  %v1467 = vpop.f32.mrb[0].mxu0
  %v1468 = vpop.f32.mrb[0].mxu0
  %v1469 = vadd.f32 0.0, %v1468
  %v1470 = vpop.f32.mrb[0].mxu0
  %1471 = vmatprep.mubr.bf16.mxu0 0
  %1472 = vmatmul.mubr.bf16.gmra.mrb[0].mxu0 %v1418
  %v1473 = vpop.f32.mrb[0].mxu0
  %v1474 = vadd.f32 0.0, %v1473
  %v1475 = vpop.f32.mrb[0].mxu0
  %v1476 = vpop.f32.mrb[0].mxu0
  %v1477 = vadd.f32 0.0, %v1476
  %v1478 = vpop.f32.mrb[0].mxu0
  %1479 = vmatprep.mubr.bf16.mxu0 0
  %1480 = vmatmul.mubr.bf16.gmra.mrb[0].mxu0 %v1421
  %v1481 = vpop.f32.mrb[0].mxu0
  %v1482 = vadd.f32 0.0, %v1481
  %v1483 = vpop.f32.mrb[0].mxu0
  %v1484 = vpop.f32.mrb[0].mxu0
  %v1485 = vadd.f32 0.0, %v1484
  %v1486 = vpop.f32.mrb[0].mxu0
  %1487 = vdwg.mxu0
  %v1488 = vmul.f32 %v1458, %v637
  %v1489 = vmul.f32 %v1461, %v638
  %v1490 = vmul.f32 %v1466, %v639
  %v1491 = vmul.f32 %v1469, %v640
  %v1492 = vmul.f32 %v1474, %v641
  %v1493 = vmul.f32 %v1477, %v642
  %v1494 = vmul.f32 %v1482, %v643
  %v1495 = vmul.f32 %v1485, %v644
  %v1496 = vpack.c.bf16 %v1489, %v1488
  %v1497 = vpack.c.bf16 %v1491, %v1490
  %v1498 = vpack.c.bf16 %v1493, %v1492
  %v1499 = vpack.c.bf16 %v1495, %v1494
  %1500 = vmatprep.subr.bf16.mxu0 0
  %1501 = vmatpush1.bf16.msra.mxu0 %v1496
  %1502 = vmatprep.subr.bf16.mxu0 0
  %1503 = vmatpush1.bf16.msra.mxu0 %v1497
  %1504 = vmatprep.subr.bf16.mxu0 0
  %1505 = vmatpush1.bf16.msra.mxu0 %v1498
  %1506 = vmatprep.subr.bf16.mxu0 0
  %1507 = vmatpush1.bf16.msra.mxu0 %v1499
  %1508 = vmatprep.subr.bf16.mxu0 0
  %1509 = vmatpush1.bf16.msra.mxu0 0
  %1510 = vmatprep.subr.bf16.mxu0 0
  %1511 = vmatpush1.bf16.msra.mxu0 0
  %1512 = vmatprep.subr.bf16.mxu0 0
  %1513 = vmatpush1.bf16.msra.mxu0 0
  %1514 = vmatprep.subr.bf16.mxu0 0
  %1515 = vmatpush1.bf16.msra.mxu0 0
  %1516 = vmatprep.subr.bf16.mxu0 0
  %1517 = vmatpush1.bf16.msra.mxu0 0
  %1518 = vmatprep.subr.bf16.mxu0 0
  %1519 = vmatpush1.bf16.msra.mxu0 0
  %1520 = vmatprep.subr.bf16.mxu0 0
  %1521 = vmatpush1.bf16.msra.mxu0 0
  %1522 = vmatprep.subr.bf16.mxu0 0
  %1523 = vmatpush1.bf16.msra.mxu0 0
  %1524 = vmatprep.subr.bf16.mxu0 0
  %1525 = vmatpush1.bf16.msra.mxu0 0
  %1526 = vmatprep.subr.bf16.mxu0 0
  %1527 = vmatpush1.bf16.msra.mxu0 0
  %1528 = vmatprep.subr.bf16.mxu0 0
  %1529 = vmatpush1.bf16.msra.mxu0 0
  %1530 = vmatprep.subr.bf16.mxu0 0
  %1531 = vmatpush1.bf16.msra.mxu0 0
  %1532 = vmatprep.mubr.bf16.mxu0 0
  %1533 = vmatmul.mubr.bf16.gmra.mrb[0].mxu0 %v665
  %v1534 = vpop.f32.mrb[0].mxu0
  %v1535 = vadd.f32 0.0, %v1534
  %v1536 = vpop.f32.mrb[0].mxu0
  %v1537 = vpop.f32.mrb[0].mxu0
  %v1538 = vadd.f32 0.0, %v1537
  %v1539 = vpop.f32.mrb[0].mxu0
  %1540 = vdwg.mxu0
  %v1541 = vpack.c.bf16 %v1538, %v1535
  %v1542 = vld [vmem:[%s3 + $0x70] sm:$0xf]
  %v1543 = vld [vmem:[%s3 + $0x74] sm:$0xf]
  %v1544 = vld [vmem:[%s3 + $0x78] sm:$0xf]
  %v1545 = vld [vmem:[%s3 + $0x7c] sm:$0xf]
  %1547 = vrot.lane.b32.xlu0 %v1541, 96
  %v1548 = vpop.permute.xlu0 %1547
  %v1553 = vunpack.c.l.b16 %v1542
  %v1554 = vunpack.c.l.b16 %v1543
  %v1555 = vunpack.c.l.b16 %v1544
  %v1556 = vunpack.c.l.b16 %v1545
  %v1557 = vpack.c.b16 %v1554, %v1553
  %v1558 = vpack.c.b16 %v1556, %v1555
  %v1562 = vsel %vm29, %v1548, 0
  %1564 = vmatprep.subr.bf16.mxu0 0
  %1565 = vmatpush1.bf16.msra.mxu0 %v1557
  %1566 = vmatprep.subr.bf16.mxu0 0
  %1567 = vmatpush1.bf16.msra.mxu0 %v1558
  %1568 = vmatprep.subr.bf16.mxu0 0
  %1569 = vmatpush1.bf16.msra.mxu0 0
  %1570 = vmatprep.subr.bf16.mxu0 0
  %1571 = vmatpush1.bf16.msra.mxu0 0
  %1572 = vmatprep.subr.bf16.mxu0 0
  %1573 = vmatpush1.bf16.msra.mxu0 0
  %1574 = vmatprep.subr.bf16.mxu0 0
  %1575 = vmatpush1.bf16.msra.mxu0 0
  %1576 = vmatprep.subr.bf16.mxu0 0
  %1577 = vmatpush1.bf16.msra.mxu0 0
  %1578 = vmatprep.subr.bf16.mxu0 0
  %1579 = vmatpush1.bf16.msra.mxu0 0
  %1580 = vmatprep.subr.bf16.mxu0 0
  %1581 = vmatpush1.bf16.msra.mxu0 0
  %1582 = vmatprep.subr.bf16.mxu0 0
  %1583 = vmatpush1.bf16.msra.mxu0 0
  %1584 = vmatprep.subr.bf16.mxu0 0
  %1585 = vmatpush1.bf16.msra.mxu0 0
  %1586 = vmatprep.subr.bf16.mxu0 0
  %1587 = vmatpush1.bf16.msra.mxu0 0
  %1588 = vmatprep.subr.bf16.mxu0 0
  %1589 = vmatpush1.bf16.msra.mxu0 0
  %1590 = vmatprep.subr.bf16.mxu0 0
  %1591 = vmatpush1.bf16.msra.mxu0 0
  %1592 = vmatprep.subr.bf16.mxu0 0
  %1593 = vmatpush1.bf16.msra.mxu0 0
  %1594 = vmatprep.subr.bf16.mxu0 0
  %1595 = vmatpush1.bf16.msra.mxu0 0
  %1596 = vmatprep.mubr.bf16.mxu0 0
  %1597 = vmatmul.mubr.bf16.gmra.mrb[0].mxu0 %v1562
  %v1598 = vpop.f32.mrb[0].mxu0
  %v1599 = vadd.f32 0.0, %v1598
  %v1600 = vpop.f32.mrb[0].mxu0
  %v1601 = vpop.f32.mrb[0].mxu0
  %v1602 = vadd.f32 0.0, %v1601
  %v1603 = vpop.f32.mrb[0].mxu0
  %1604 = vdwg.mxu0
  %v1605 = vadd.f32 %v988, %v1599
  %v1606 = vadd.f32 %v989, %v1602
  %v1607 = vsel %vm29, %v1605, 0.0
  %1608 = vadd.xlane.f32.xlu0 %v1607
  %v1609 = vpop.xlane.xlu0 %1608
  %v1610 = vsel %vm29, %v1606, 0.0
  %1611 = vadd.xlane.f32.xlu0 %v1610
  %v1612 = vpop.xlane.xlu0 %1611
  %v1613 = vmul.f32 %v1609, %v36
  %v1614 = vmul.f32 %v1612, %v36
  %v1615 = vsub.f32 %v1605, %v1613
  %v1616 = vsub.f32 %v1606, %v1614
  %v1617 = vmul.f32 %v1615, %v1615
  %v1618 = vmul.f32 %v1616, %v1616
  %v1619 = vsel %vm29, %v1617, 0.0
  %1620 = vadd.xlane.f32.xlu0 %v1619
  %v1621 = vpop.xlane.xlu0 %1620
  %v1622 = vsel %vm29, %v1618, 0.0
  %1623 = vadd.xlane.f32.xlu0 %v1622
  %v1624 = vpop.xlane.xlu0 %1623
  %v1625 = vmul.f32 %v1621, %v36
  %v1626 = vmul.f32 %v1624, %v36
  %v1627 = vadd.f32 %v1625, 1e-05
  %v1628 = vadd.f32 %v1626, 1e-05
  %v1629 = vrsqrt.pop %v1627
  %v1630 = vrsqrt.pop %v1628
  %v1631 = vmul.f32 %v1615, %v1629
  %v1632 = vmul.f32 %v1616, %v1630
  %v1633 = vlaneseq
  %v1634 = vshrl.u32 %v1633, 7
  %v1635 = vsub.s32 0, %v1634
  %v1636 = vrot.slane %v992, %v1635
  %v1637 = vmul.f32 %v1631, %v1636
  %v1638 = vmul.f32 %v1632, %v1636
  %v1639 = vlaneseq
  %v1640 = vshrl.u32 %v1639, 7
  %v1641 = vsub.s32 0, %v1640
  %v1642 = vrot.slane %v993, %v1641
  %v1643 = vadd.f32 %v1637, %v1642
  %v1644 = vadd.f32 %v1638, %v1642
  %v1645 = vpack.c.bf16 %v1644, %v1643
  %v1646 = vld [vmem:[%s3 + $0x60] sm:$0xf]
  %v1647 = vld [vmem:[%s3 + $0x64] sm:$0xf]
  %v1648 = vld [vmem:[%s3 + $0x68] sm:$0xf]
  %v1649 = vld [vmem:[%s3 + $0x6c] sm:$0xf]
  %v1650 = vlaneseq
  %v1651 = vshrl.u32 %v1650, 7
  %v1652 = vsub.s32 0, %v1651
  %v1653 = vrot.slane %v994, %v1652
  %v1658 = vunpack.c.l.b16 %v1646
  %v1659 = vunpack.c.l.b16 %v1647
  %v1660 = vunpack.c.l.b16 %v1648
  %v1661 = vunpack.c.l.b16 %v1649
  %v1662 = vpack.c.b16 %v1659, %v1658
  %v1663 = vpack.c.b16 %v1661, %v1660
  %v1667 = vsel %vm29, %v1645, 0
  %1669 = vmatprep.subr.bf16.mxu0 0
  %1670 = vmatpush1.bf16.msra.mxu0 %v1662
  %1671 = vmatprep.subr.bf16.mxu0 0
  %1672 = vmatpush1.bf16.msra.mxu0 %v1663
  %1673 = vmatprep.subr.bf16.mxu0 0
  %1674 = vmatpush1.bf16.msra.mxu0 0
  %1675 = vmatprep.subr.bf16.mxu0 0
  %1676 = vmatpush1.bf16.msra.mxu0 0
  %1677 = vmatprep.subr.bf16.mxu0 0
  %1678 = vmatpush1.bf16.msra.mxu0 0
  %1679 = vmatprep.subr.bf16.mxu0 0
  %1680 = vmatpush1.bf16.msra.mxu0 0
  %1681 = vmatprep.subr.bf16.mxu0 0
  %1682 = vmatpush1.bf16.msra.mxu0 0
  %1683 = vmatprep.subr.bf16.mxu0 0
  %1684 = vmatpush1.bf16.msra.mxu0 0
  %1685 = vmatprep.subr.bf16.mxu0 0
  %1686 = vmatpush1.bf16.msra.mxu0 0
  %1687 = vmatprep.subr.bf16.mxu0 0
  %1688 = vmatpush1.bf16.msra.mxu0 0
  %1689 = vmatprep.subr.bf16.mxu0 0
  %1690 = vmatpush1.bf16.msra.mxu0 0
  %1691 = vmatprep.subr.bf16.mxu0 0
  %1692 = vmatpush1.bf16.msra.mxu0 0
  %1693 = vmatprep.subr.bf16.mxu0 0
  %1694 = vmatpush1.bf16.msra.mxu0 0
  %1695 = vmatprep.subr.bf16.mxu0 0
  %1696 = vmatpush1.bf16.msra.mxu0 0
  %1697 = vmatprep.subr.bf16.mxu0 0
  %1698 = vmatpush1.bf16.msra.mxu0 0
  %1699 = vmatprep.subr.bf16.mxu0 0
  %1700 = vmatpush1.bf16.msra.mxu0 0
  %1701 = vmatprep.mubr.bf16.mxu0 0
  %1702 = vmatmul.mubr.bf16.gmra.mrb[0].mxu0 %v1667
  %v1703 = vpop.f32.mrb[0].mxu0
  %v1704 = vadd.f32 %v1653, %v1703
  %v1705 = vpop.f32.mrb[0].mxu0
  %v1706 = vpop.f32.mrb[0].mxu0
  %v1707 = vadd.f32 %v1653, %v1706
  %v1708 = vpop.f32.mrb[0].mxu0
  %1709 = vdwg.mxu0
  %v1710 = vmul.f32 %v1704, 0.5
  %v1711 = vmul.f32 %v1707, 0.5
  %v1712 = vmul.f32 %v1704, 0.044715
  %v1713 = vmul.f32 %v1707, 0.044715
  %v1714 = vmul.f32 %v1712, %v1704
  %v1715 = vmul.f32 %v1713, %v1707
  %v1716 = vmul.f32 %v1714, %v1704
  %v1717 = vmul.f32 %v1715, %v1707
  %v1718 = vadd.f32 %v1704, %v1716
  %v1719 = vadd.f32 %v1707, %v1717
  %v1720 = vmul.f32 %v1718, 0.7978846
  %v1721 = vmul.f32 %v1719, 0.7978846
  %v1722 = vtanh.pop %v1720
  %v1723 = vtanh.pop %v1721
  %v1724 = vadd.f32 %v1722, 1.0
  %v1725 = vadd.f32 %v1723, 1.0
  %v1726 = vmul.f32 %v1710, %v1724
  %v1727 = vmul.f32 %v1711, %v1725
  %1730 = vrot.lane.b32.xlu0 %v1726, 64
  %v1731 = vpop.permute.xlu0 %1730
  %1732 = vrot.lane.b32.xlu0 %v1727, 64
  %v1733 = vpop.permute.xlu0 %1732
  %v1736 = vmul.f32 %v1704, %v1731
  %v1737 = vmul.f32 %v1707, %v1733
  %v1738 = vpack.c.bf16 %v1737, %v1736
  %v1739 = vld [vmem:[%s3 + $0x80] sm:$0xf]
  %v1740 = vld [vmem:[%s3 + $0x84] sm:$0xf]
  %v1741 = vld [vmem:[%s3 + $0x88] sm:$0xf]
  %v1742 = vld [vmem:[%s3 + $0x8c] sm:$0xf]
  %v1743 = vld [vmem:[%s3 + $0x90] sm:$0xf]
  %v1744 = vld [vmem:[%s3 + $0x94] sm:$0xf]
  %v1745 = vld [vmem:[%s3 + $0x98] sm:$0xf]
  %v1746 = vld [vmem:[%s3 + $0x9c] sm:$0xf]
  %v1755 = vunpack.c.l.b16 %v1739
  %v1756 = vunpack.c.l.b16 %v1740
  %v1757 = vunpack.c.l.b16 %v1741
  %v1758 = vunpack.c.l.b16 %v1742
  %v1759 = vunpack.c.l.b16 %v1743
  %v1760 = vunpack.c.l.b16 %v1744
  %v1761 = vunpack.c.l.b16 %v1745
  %v1762 = vunpack.c.l.b16 %v1746
  %v1763 = vpack.c.b16 %v1756, %v1755
  %v1764 = vpack.c.b16 %v1758, %v1757
  %v1765 = vpack.c.b16 %v1760, %v1759
  %v1766 = vpack.c.b16 %v1762, %v1761
  %v1772 = vsel %vm331, %v1738, 0
  %1774 = vmatprep.subr.bf16.mxu0 0
  %1775 = vmatpush1.bf16.msra.mxu0 %v1763
  %1776 = vmatprep.subr.bf16.mxu0 0
  %1777 = vmatpush1.bf16.msra.mxu0 %v1764
  %1778 = vmatprep.subr.bf16.mxu0 0
  %1779 = vmatpush1.bf16.msra.mxu0 %v1765
  %1780 = vmatprep.subr.bf16.mxu0 0
  %1781 = vmatpush1.bf16.msra.mxu0 %v1766
  %1782 = vmatprep.subr.bf16.mxu0 0
  %1783 = vmatpush1.bf16.msra.mxu0 0
  %1784 = vmatprep.subr.bf16.mxu0 0
  %1785 = vmatpush1.bf16.msra.mxu0 0
  %1786 = vmatprep.subr.bf16.mxu0 0
  %1787 = vmatpush1.bf16.msra.mxu0 0
  %1788 = vmatprep.subr.bf16.mxu0 0
  %1789 = vmatpush1.bf16.msra.mxu0 0
  %1790 = vmatprep.subr.bf16.mxu0 0
  %1791 = vmatpush1.bf16.msra.mxu0 0
  %1792 = vmatprep.subr.bf16.mxu0 0
  %1793 = vmatpush1.bf16.msra.mxu0 0
  %1794 = vmatprep.subr.bf16.mxu0 0
  %1795 = vmatpush1.bf16.msra.mxu0 0
  %1796 = vmatprep.subr.bf16.mxu0 0
  %1797 = vmatpush1.bf16.msra.mxu0 0
  %1798 = vmatprep.subr.bf16.mxu0 0
  %1799 = vmatpush1.bf16.msra.mxu0 0
  %1800 = vmatprep.subr.bf16.mxu0 0
  %1801 = vmatpush1.bf16.msra.mxu0 0
  %1802 = vmatprep.subr.bf16.mxu0 0
  %1803 = vmatpush1.bf16.msra.mxu0 0
  %1804 = vmatprep.subr.bf16.mxu0 0
  %1805 = vmatpush1.bf16.msra.mxu0 0
  %1806 = vmatprep.mubr.bf16.mxu0 0
  %1807 = vmatmul.mubr.bf16.gmra.mrb[0].mxu0 %v1772
  %v1808 = vpop.f32.mrb[0].mxu0
  %v1809 = vadd.f32 0.0, %v1808
  %v1810 = vpop.f32.mrb[0].mxu0
  %v1811 = vpop.f32.mrb[0].mxu0
  %v1812 = vadd.f32 0.0, %v1811
  %v1813 = vpop.f32.mrb[0].mxu0
  %1814 = vdwg.mxu0
  %v1815 = vadd.f32 %v1605, %v1809
  %v1816 = vadd.f32 %v1606, %v1812
  %v1817 = vlaneseq
  %v1818 = vshrl.u32 %v1817, 7
  %v1819 = vsub.s32 0, %v1818
  %v1820 = vrot.slane %v995, %v1819
  %v1821 = vadd.f32 %v1815, %v1820
  %v1822 = vadd.f32 %v1816, %v1820
  %v1823 = vld [vmem:[%s4 + $0xc] sm:$0x1]
  %v1824 = vld [vmem:[%s4 + $0xd] sm:$0x1]
  %v1825 = vsel %vm29, %v1821, 0.0
  %1826 = vadd.xlane.f32.xlu0 %v1825
  %v1827 = vpop.xlane.xlu0 %1826
  %v1828 = vsel %vm29, %v1822, 0.0
  %1829 = vadd.xlane.f32.xlu0 %v1828
  %v1830 = vpop.xlane.xlu0 %1829
  %v1831 = vmul.f32 %v1827, %v36
  %v1832 = vmul.f32 %v1830, %v36
  %v1833 = vsub.f32 %v1821, %v1831
  %v1834 = vsub.f32 %v1822, %v1832
  %v1835 = vmul.f32 %v1833, %v1833
  %v1836 = vmul.f32 %v1834, %v1834
  %v1837 = vsel %vm29, %v1835, 0.0
  %1838 = vadd.xlane.f32.xlu0 %v1837
  %v1839 = vpop.xlane.xlu0 %1838
  %v1840 = vsel %vm29, %v1836, 0.0
  %1841 = vadd.xlane.f32.xlu0 %v1840
  %v1842 = vpop.xlane.xlu0 %1841
  %v1843 = vmul.f32 %v1839, %v36
  %v1844 = vmul.f32 %v1842, %v36
  %v1845 = vadd.f32 %v1843, 1e-05
  %v1846 = vadd.f32 %v1844, 1e-05
  %v1847 = vrsqrt.pop %v1845
  %v1848 = vrsqrt.pop %v1846
  %v1849 = vmul.f32 %v1833, %v1847
  %v1850 = vmul.f32 %v1834, %v1848
  %v1851 = vlaneseq
  %v1852 = vshrl.u32 %v1851, 7
  %v1853 = vsub.s32 0, %v1852
  %v1854 = vrot.slane %v1823, %v1853
  %v1855 = vmul.f32 %v1849, %v1854
  %v1856 = vmul.f32 %v1850, %v1854
  %v1857 = vlaneseq
  %v1858 = vshrl.u32 %v1857, 7
  %v1859 = vsub.s32 0, %v1858
  %v1860 = vrot.slane %v1824, %v1859
  %v1861 = vadd.f32 %v1855, %v1860
  %v1862 = vadd.f32 %v1856, %v1860
  %v1863 = vpack.c.bf16 %v1862, %v1861
  %v1864 = vld [vmem:[%s3 + $0xa0] sm:$0xf]
  %v1865 = vld [vmem:[%s3 + $0xa4] sm:$0xf]
  %v1866 = vld [vmem:[%s3 + $0xa8] sm:$0xf]
  %v1867 = vld [vmem:[%s3 + $0xac] sm:$0xf]
  %v1868 = vld [vmem:[%s4 + $0xe] sm:$0x1]
  %v1869 = vlaneseq
  %v1870 = vshrl.u32 %v1869, 7
  %v1871 = vsub.s32 0, %v1870
  %v1872 = vrot.slane %v1868, %v1871
  %v1877 = vunpack.c.l.b16 %v1864
  %v1878 = vunpack.c.l.b16 %v1865
  %v1879 = vunpack.c.l.b16 %v1866
  %v1880 = vunpack.c.l.b16 %v1867
  %v1881 = vpack.c.b16 %v1878, %v1877
  %v1882 = vpack.c.b16 %v1880, %v1879
  %v1886 = vsel %vm29, %v1863, 0
  %1888 = vmatprep.subr.bf16.mxu0 0
  %1889 = vmatpush1.bf16.msra.mxu0 %v1881
  %1890 = vmatprep.subr.bf16.mxu0 0
  %1891 = vmatpush1.bf16.msra.mxu0 %v1882
  %1892 = vmatprep.subr.bf16.mxu0 0
  %1893 = vmatpush1.bf16.msra.mxu0 0
  %1894 = vmatprep.subr.bf16.mxu0 0
  %1895 = vmatpush1.bf16.msra.mxu0 0
  %1896 = vmatprep.subr.bf16.mxu0 0
  %1897 = vmatpush1.bf16.msra.mxu0 0
  %1898 = vmatprep.subr.bf16.mxu0 0
  %1899 = vmatpush1.bf16.msra.mxu0 0
  %1900 = vmatprep.subr.bf16.mxu0 0
  %1901 = vmatpush1.bf16.msra.mxu0 0
  %1902 = vmatprep.subr.bf16.mxu0 0
  %1903 = vmatpush1.bf16.msra.mxu0 0
  %1904 = vmatprep.subr.bf16.mxu0 0
  %1905 = vmatpush1.bf16.msra.mxu0 0
  %1906 = vmatprep.subr.bf16.mxu0 0
  %1907 = vmatpush1.bf16.msra.mxu0 0
  %1908 = vmatprep.subr.bf16.mxu0 0
  %1909 = vmatpush1.bf16.msra.mxu0 0
  %1910 = vmatprep.subr.bf16.mxu0 0
  %1911 = vmatpush1.bf16.msra.mxu0 0
  %1912 = vmatprep.subr.bf16.mxu0 0
  %1913 = vmatpush1.bf16.msra.mxu0 0
  %1914 = vmatprep.subr.bf16.mxu0 0
  %1915 = vmatpush1.bf16.msra.mxu0 0
  %1916 = vmatprep.subr.bf16.mxu0 0
  %1917 = vmatpush1.bf16.msra.mxu0 0
  %1918 = vmatprep.subr.bf16.mxu0 0
  %1919 = vmatpush1.bf16.msra.mxu0 0
  %1920 = vmatprep.mubr.bf16.mxu0 0
  %1921 = vmatmul.mubr.bf16.gmra.mrb[0].mxu0 %v1886
  %v1922 = vpop.f32.mrb[0].mxu0
  %v1923 = vadd.f32 %v1872, %v1922
  %v1924 = vpop.f32.mrb[0].mxu0
  %v1925 = vpop.f32.mrb[0].mxu0
  %v1926 = vadd.f32 %v1872, %v1925
  %v1927 = vpop.f32.mrb[0].mxu0
  %1928 = vdwg.mxu0
  %1929 = vst.msk [vmem:[%s5] sm:$0xff] %vm331, %v1923
  %1930 = vst.msk [vmem:[%s5 + $0x8] sm:$0xff] %vm331, %v1926
  // Predicated region
  $region22: #{decoder_model_forward.1} parent=0 // pred_check
    _
  $region23: #{decoder_model_forward.1} parent=0 // pred_check_branch
    %1932 = sbr.rel (0) target = $region25
  $region24: #{decoder_model_forward.1} parent=0 // pred_region
    _
  $region25: #{decoder_model_forward.1} parent=0 // pred_fallthru
    _
  // Predicated region
  $region26: #{decoder_model_forward.1} parent=0 // pred_check
    _
  $region27: #{decoder_model_forward.1} parent=0 // pred_check_branch
    %1934 = sbr.rel (0) target = $region29
  $region28: #{decoder_model_forward.1} parent=0 // pred_region
    _
  $region29: #{decoder_model_forward.1} parent=0 // pred_fallthru
    _

</llo_original>
